<compile_context>
chip_gen: v6e
topology: v6e:2x2x1
jax: 0.10.0
libtpu: 0.0.40
codegen_flags: <defaults>
</compile_context>

<pallas_src>
import functools

import jax
import jax.numpy as jnp
from jax import lax
from jax.experimental import pallas as pl
from jax.experimental.pallas import tpu as pltpu


def _sigmoid(x):
    # exp + divide lower cleanly to EUP/VPU; matches jax.nn.sigmoid numerically.
    return 1.0 / (1.0 + jnp.exp(-x))


def _convgru_kernel(catp_ref, valid_ref, wa_ref, wb_ref, bcat_ref, o_ref,
                    pan1_ref, pan2_ref, gpad_ref, *,
                    W, PH, PW, Ch, Ccp, Mt, HALO):
    """One batch element per grid step.  All tensors are channel-major:
    (channels on sublanes, flattened H*W on lanes)."""
    taps = [(dh, dw) for dh in range(-PH, PH + 1) for dw in range(-PW, PW + 1)]

    def masked_window(src_ref, r, dh, dw):
        # result[c, m] = src[c, m + dh*W + dw], zero outside the image:
        # row overflow reads the zero lane-halo, column wrap is masked.
        start = HALO + dh * W + dw                  # static lane offset
        win = src_ref[:, start:start + Mt]          # (C, Mt) f32
        return win * valid_ref[r:r + 1, :]

    # ---- stage 1: im2col panel of cat=[h|x|0] + one fused bf16 MXU dot ------
    for r, (dh, dw) in enumerate(taps):
        pan1_ref[r * Ccp:(r + 1) * Ccp, :] = (
            masked_window(catp_ref, r, dh, dw).astype(jnp.bfloat16))

    h = catp_ref[:Ch, HALO:HALO + Mt]               # (Ch, Mt) f32 hidden state

    acc = jnp.dot(wa_ref[...], pan1_ref[...],
                  preferred_element_type=jnp.float32) + bcat_ref[...]
    # acc rows: [0:Ch) reset | [Ch:2Ch) update | [2Ch:3Ch) conv2 x-partial (+b2)

    reset_gate = _sigmoid(acc[:Ch, :])
    update_gate = _sigmoid(acc[Ch:2 * Ch, :])
    gated = reset_gate * h                          # (Ch, Mt) f32

    # ---- stage 2: gated-hidden im2col panel + one bf16 MXU dot --------------
    zeros_halo = jnp.zeros((Ch, HALO), jnp.float32)
    gpad_ref[:, :HALO] = zeros_halo                 # only the halo stripes
    gpad_ref[:, HALO + Mt:] = zeros_halo
    gpad_ref[:, HALO:HALO + Mt] = gated             # 128-lane aligned store
    for r, (dh, dw) in enumerate(taps):
        pan2_ref[r * Ch:(r + 1) * Ch, :] = masked_window(gpad_ref, r, dh, dw)

    ct = jnp.tanh(acc[2 * Ch:, :] +
                  jnp.dot(wb_ref[...], pan2_ref[...].astype(jnp.bfloat16),
                          preferred_element_type=jnp.float32))

    # lane-dense (Ch, Mt) store; wrapper reshape back to NCHW is free plumbing.
    o_ref[...] = update_gate * h + (1.0 - update_gate) * ct


def conv_gru_cell(x_nchw, h_nchw, w1, b1, w2, b2, kernel_size):
    """ConvGRUCell.forward; NCHW inputs/outputs like the PyTorch module."""
    KH, KW = kernel_size
    assert KH % 2 == 1 and KW % 2 == 1, "odd kernel sizes only ('same' padding)"
    PH, PW = KH // 2, KW // 2
    N, Cin, H, W = x_nchw.shape
    Ch = h_nchw.shape[1]
    Cc = Cin + Ch
    Ccp = -(-Cc // 16) * 16                # pad in-channels: bf16 sublane-pack aligned
    Mt = H * W
    HALO = -(-(PH * W + PW) // 128) * 128  # lane-aligned halo >= max |tap shift|
    f32 = jnp.float32

    # ---- layout glue: NCHW -> channel-major flat, channel order [h | x | 0] --
    x = x_nchw.astype(f32).reshape(N, Cin, Mt)
    h = h_nchw.astype(f32).reshape(N, Ch, Mt)
    cat = jnp.concatenate([h, x, jnp.zeros((N, Ccp - Cc, Mt), f32)], axis=1)
    catp = jnp.pad(cat, ((0, 0), (0, 0), (HALO, HALO)))       # flat zero halo

    # ---- per-tap border mask (kills column wrap of the flat lane shift) ------
    taps = [(dh, dw) for dh in range(-PH, PH + 1) for dw in range(-PW, PW + 1)]
    ii = jnp.arange(Mt, dtype=jnp.int32) // W
    jj = jnp.arange(Mt, dtype=jnp.int32) % W
    valid = jnp.stack(
        [((ii + dh >= 0) & (ii + dh < H) & (jj + dw >= 0) & (jj + dw < W))
         .astype(f32) for dh, dw in taps])                    # (KH*KW, Mt)

    # ---- fused weights, channel-major, tap-major K blocks of width Ccp -------
    def reorder(w):  # (O, [x|h], KH, KW) -> (O, KH*KW, Ccp) with [h|x|0] order
        w_hx = jnp.concatenate([w[:, Cin:], w[:, :Cin]], axis=1)
        w_hx = jnp.pad(w_hx, ((0, 0), (0, Ccp - Cc), (0, 0), (0, 0)))
        return jnp.transpose(w_hx, (0, 2, 3, 1)).reshape(w.shape[0], KH * KW, Ccp)

    w1_r = reorder(w1.astype(f32))                            # (2Ch, KH*KW, Ccp)
    w2_r = reorder(w2.astype(f32))                            # (Ch,  KH*KW, Ccp)
    w2_x = w2_r.at[:, :, :Ch].set(0.0)                        # conv2: x-only partial
    wa = jnp.concatenate([w1_r, w2_x], axis=0).reshape(
        3 * Ch, KH * KW * Ccp).astype(jnp.bfloat16)           # (3Ch, K1)
    wb = w2_r[:, :, :Ch].reshape(Ch, KH * KW * Ch).astype(jnp.bfloat16)  # (Ch, K2)
    bcat = jnp.concatenate([b1, b2]).reshape(3 * Ch, 1).astype(f32)

    kernel = functools.partial(_convgru_kernel, W=W, PH=PH, PW=PW, Ch=Ch,
                               Ccp=Ccp, Mt=Mt, HALO=HALO)

    out = pl.pallas_call(
        kernel,
        out_shape=jax.ShapeDtypeStruct((N, Ch, Mt), f32),
        grid_spec=pltpu.PrefetchScalarGridSpec(
            num_scalar_prefetch=0,
            grid=(N,),                                 # one batch element per step
            in_specs=[
                pl.BlockSpec((None, Ccp, Mt + 2 * HALO), lambda n: (n, 0, 0)),
                pl.BlockSpec((KH * KW, Mt), lambda n: (0, 0)),
                pl.BlockSpec((3 * Ch, KH * KW * Ccp), lambda n: (0, 0)),
                pl.BlockSpec((Ch, KH * KW * Ch), lambda n: (0, 0)),
                pl.BlockSpec((3 * Ch, 1), lambda n: (0, 0)),
            ],
            out_specs=pl.BlockSpec((None, Ch, Mt), lambda n: (n, 0, 0)),
            scratch_shapes=[
                pltpu.VMEM((KH * KW * Ccp, Mt), jnp.bfloat16),  # stage-1 panel
                pltpu.VMEM((KH * KW * Ch, Mt), f32),            # stage-2 panel
                pltpu.VMEM((Ch, Mt + 2 * HALO), f32),           # gated map + halo
            ],
        ),
        compiler_params=pltpu.CompilerParams(
            dimension_semantics=("parallel",)),        # v7x: 2nd TC takes batch 1
    )(catp, valid, wa, wb, bcat)

    # (N, Ch, H*W) is already NCHW, just unflatten the spatial axis.
    return out.reshape(N, Ch, H, W)


def _ref_forward(x, h, w1, b1, w2, b2, padding):
    """Pure-JAX NCHW reference (mirrors the PyTorch module, all f32)."""
    pads = [(padding[0], padding[0]), (padding[1], padding[1])]
    dn = ('NCHW', 'OIHW', 'NCHW')
    cat = jnp.concatenate([x, h], axis=1)
    c1 = lax.conv_general_dilated(cat, w1, (1, 1), pads, dimension_numbers=dn)
    c1 = c1 + b1[None, :, None, None]
    rt, ut = jnp.split(c1, 2, axis=1)
    reset_gate = jax.nn.sigmoid(rt)
    update_gate = jax.nn.sigmoid(ut)
    gated = reset_gate * h
    cat2 = jnp.concatenate([x, gated], axis=1)
    p1 = lax.conv_general_dilated(cat2, w2, (1, 1), pads, dimension_numbers=dn)
    p1 = p1 + b2[None, :, None, None]
    ct = jnp.tanh(p1)
    return update_gate * h + (1.0 - update_gate) * ct


if __name__ == "__main__":
    # Small shapes consistent with the module's forward.
    N, Cin, Ch, H, W = 2, 4, 8, 16, 16
    kernel_size = (3, 3)
    KH, KW = kernel_size

    key = jax.random.PRNGKey(0)
    kx, kh_, kw1, kb1, kw2, kb2 = jax.random.split(key, 6)

    x = jax.random.normal(kx, (N, Cin, H, W), dtype=jnp.float32)
    h0 = jax.random.normal(kh_, (N, Ch, H, W), dtype=jnp.float32)
    # nn.Conv2d shapes from the module's __init__ (both convs have bias).
    w1 = 0.1 * jax.random.normal(kw1, (2 * Ch, Cin + Ch, KH, KW), dtype=jnp.float32)
    b1 = 0.1 * jax.random.normal(kb1, (2 * Ch,), dtype=jnp.float32)
    w2 = 0.1 * jax.random.normal(kw2, (Ch, Cin + Ch, KH, KW), dtype=jnp.float32)
    b2 = 0.1 * jax.random.normal(kb2, (Ch,), dtype=jnp.float32)

    out = jax.block_until_ready(conv_gru_cell(x, h0, w1, b1, w2, b2, kernel_size))
    ref = jax.block_until_ready(
        _ref_forward(x, h0, w1, b1, w2, b2, (KH // 2, KW // 2)))

    assert out.shape == (N, Ch, H, W), out.shape
    # The kernel deliberately uses bf16 MXU operands (f32 accumulation); against
    # the pure-f32 reference the expected max abs error is O(1e-3 .. 1e-2) for
    # N(0,1) inputs and 0.1*N(0,1) weights (no pre-rounding tricks).
    max_err = float(jnp.max(jnp.abs(out - ref)))
    assert jnp.allclose(out, ref, atol=2e-2, rtol=2e-2), max_err

    print("KERNEL_OK")
</pallas_src>

<mosaic_0001>
module attributes {stable_mosaic.version = 11 : i64} {
  func.func @_convgru_kernel(%arg0: i32, %arg1: memref<1x16x512xf32, #tpu.memory_space<vmem>>, %arg2: memref<9x256xf32, #tpu.memory_space<vmem>>, %arg3: memref<24x144xbf16, #tpu.memory_space<vmem>>, %arg4: memref<8x72xbf16, #tpu.memory_space<vmem>>, %arg5: memref<24x1xf32, #tpu.memory_space<vmem>>, %arg6: memref<1x8x256xf32, #tpu.memory_space<vmem>>, %arg7: memref<144x256xbf16, #tpu.memory_space<vmem>>, %arg8: memref<72x256xf32, #tpu.memory_space<vmem>>, %arg9: memref<8x512xf32, #tpu.memory_space<vmem>>) attributes {dimension_semantics = [#tpu.dimension_semantics<parallel>], iteration_bounds = array<i64: 2>, scalar_prefetch = 0 : i64, scratch_operands = 3 : i64, tpu.core_type = #tpu.core_type<tc>, window_params = [{transform_indices = @transform_0, window_bounds = array<i64: 1, 16, 512>}, {pipeline_mode = #tpu.pipeline_mode<synchronous>, transform_indices = @transform_1, window_bounds = array<i64: 9, 256>}, {pipeline_mode = #tpu.pipeline_mode<synchronous>, transform_indices = @transform_2, window_bounds = array<i64: 24, 144>}, {pipeline_mode = #tpu.pipeline_mode<synchronous>, transform_indices = @transform_3, window_bounds = array<i64: 8, 72>}, {pipeline_mode = #tpu.pipeline_mode<synchronous>, transform_indices = @transform_4, window_bounds = array<i64: 24, 1>}, {transform_indices = @transform_5, window_bounds = array<i64: 1, 8, 256>}]} {
    %c0 = arith.constant 0 : index
    %c0_0 = arith.constant 0 : index
    %c111 = arith.constant 111 : index
    %0 = vector.load %arg1[%c0, %c0_0, %c111] : memref<1x16x512xf32, #tpu.memory_space<vmem>>, vector<1x16x256xf32>
    %1 = vector.shape_cast %0 : vector<1x16x256xf32> to vector<16x256xf32>
    %c0_1 = arith.constant 0 : index
    %c0_2 = arith.constant 0 : index
    %2 = vector.load %arg2[%c0_1, %c0_2] : memref<9x256xf32, #tpu.memory_space<vmem>>, vector<1x256xf32>
    %3 = vector.broadcast %2 : vector<1x256xf32> to vector<16x256xf32>
    %4 = arith.mulf %1, %3 : vector<16x256xf32>
    %5 = arith.truncf %4 : vector<16x256xf32> to vector<16x256xbf16>
    %c0_3 = arith.constant 0 : index
    %c0_4 = arith.constant 0 : index
    %6 = vector.load %arg7[%c0_3, %c0_4] : memref<144x256xbf16, #tpu.memory_space<vmem>>, vector<16x256xbf16>
    tpu.vector_store %arg7[%c0_3, %c0_4], %5 {strides = array<i32>} : memref<144x256xbf16, #tpu.memory_space<vmem>>, vector<16x256xbf16>,
    %c0_5 = arith.constant 0 : index
    %c0_6 = arith.constant 0 : index
    %c112 = arith.constant 112 : index
    %7 = vector.load %arg1[%c0_5, %c0_6, %c112] : memref<1x16x512xf32, #tpu.memory_space<vmem>>, vector<1x16x256xf32>
    %8 = vector.shape_cast %7 : vector<1x16x256xf32> to vector<16x256xf32>
    %c1 = arith.constant 1 : index
    %c0_7 = arith.constant 0 : index
    %9 = vector.load %arg2[%c1, %c0_7] : memref<9x256xf32, #tpu.memory_space<vmem>>, vector<1x256xf32>
    %10 = vector.broadcast %9 : vector<1x256xf32> to vector<16x256xf32>
    %11 = arith.mulf %8, %10 : vector<16x256xf32>
    %12 = arith.truncf %11 : vector<16x256xf32> to vector<16x256xbf16>
    %c16 = arith.constant 16 : index
    %c0_8 = arith.constant 0 : index
    %13 = vector.load %arg7[%c16, %c0_8] : memref<144x256xbf16, #tpu.memory_space<vmem>>, vector<16x256xbf16>
    tpu.vector_store %arg7[%c16, %c0_8], %12 {strides = array<i32>} : memref<144x256xbf16, #tpu.memory_space<vmem>>, vector<16x256xbf16>,
    %c0_9 = arith.constant 0 : index
    %c0_10 = arith.constant 0 : index
    %c113 = arith.constant 113 : index
    %14 = vector.load %arg1[%c0_9, %c0_10, %c113] : memref<1x16x512xf32, #tpu.memory_space<vmem>>, vector<1x16x256xf32>
    %15 = vector.shape_cast %14 : vector<1x16x256xf32> to vector<16x256xf32>
    %c2 = arith.constant 2 : index
    %c0_11 = arith.constant 0 : index
    %16 = vector.load %arg2[%c2, %c0_11] : memref<9x256xf32, #tpu.memory_space<vmem>>, vector<1x256xf32>
    %17 = vector.broadcast %16 : vector<1x256xf32> to vector<16x256xf32>
    %18 = arith.mulf %15, %17 : vector<16x256xf32>
    %19 = arith.truncf %18 : vector<16x256xf32> to vector<16x256xbf16>
    %c32 = arith.constant 32 : index
    %c0_12 = arith.constant 0 : index
    %20 = vector.load %arg7[%c32, %c0_12] : memref<144x256xbf16, #tpu.memory_space<vmem>>, vector<16x256xbf16>
    tpu.vector_store %arg7[%c32, %c0_12], %19 {strides = array<i32>} : memref<144x256xbf16, #tpu.memory_space<vmem>>, vector<16x256xbf16>,
    %c0_13 = arith.constant 0 : index
    %c0_14 = arith.constant 0 : index
    %c127 = arith.constant 127 : index
    %21 = vector.load %arg1[%c0_13, %c0_14, %c127] : memref<1x16x512xf32, #tpu.memory_space<vmem>>, vector<1x16x256xf32>
    %22 = vector.shape_cast %21 : vector<1x16x256xf32> to vector<16x256xf32>
    %c3 = arith.constant 3 : index
    %c0_15 = arith.constant 0 : index
    %23 = vector.load %arg2[%c3, %c0_15] : memref<9x256xf32, #tpu.memory_space<vmem>>, vector<1x256xf32>
    %24 = vector.broadcast %23 : vector<1x256xf32> to vector<16x256xf32>
    %25 = arith.mulf %22, %24 : vector<16x256xf32>
    %26 = arith.truncf %25 : vector<16x256xf32> to vector<16x256xbf16>
    %c48 = arith.constant 48 : index
    %c0_16 = arith.constant 0 : index
    %27 = vector.load %arg7[%c48, %c0_16] : memref<144x256xbf16, #tpu.memory_space<vmem>>, vector<16x256xbf16>
    tpu.vector_store %arg7[%c48, %c0_16], %26 {strides = array<i32>} : memref<144x256xbf16, #tpu.memory_space<vmem>>, vector<16x256xbf16>,
    %c0_17 = arith.constant 0 : index
    %c0_18 = arith.constant 0 : index
    %c128 = arith.constant 128 : index
    %28 = vector.load %arg1[%c0_17, %c0_18, %c128] : memref<1x16x512xf32, #tpu.memory_space<vmem>>, vector<1x16x256xf32>
    %29 = vector.shape_cast %28 : vector<1x16x256xf32> to vector<16x256xf32>
    %c4 = arith.constant 4 : index
    %c0_19 = arith.constant 0 : index
    %30 = vector.load %arg2[%c4, %c0_19] : memref<9x256xf32, #tpu.memory_space<vmem>>, vector<1x256xf32>
    %31 = vector.broadcast %30 : vector<1x256xf32> to vector<16x256xf32>
    %32 = arith.mulf %29, %31 : vector<16x256xf32>
    %33 = arith.truncf %32 : vector<16x256xf32> to vector<16x256xbf16>
    %c64 = arith.constant 64 : index
    %c0_20 = arith.constant 0 : index
    %34 = vector.load %arg7[%c64, %c0_20] : memref<144x256xbf16, #tpu.memory_space<vmem>>, vector<16x256xbf16>
    tpu.vector_store %arg7[%c64, %c0_20], %33 {strides = array<i32>} : memref<144x256xbf16, #tpu.memory_space<vmem>>, vector<16x256xbf16>,
    %c0_21 = arith.constant 0 : index
    %c0_22 = arith.constant 0 : index
    %c129 = arith.constant 129 : index
    %35 = vector.load %arg1[%c0_21, %c0_22, %c129] : memref<1x16x512xf32, #tpu.memory_space<vmem>>, vector<1x16x256xf32>
    %36 = vector.shape_cast %35 : vector<1x16x256xf32> to vector<16x256xf32>
    %c5 = arith.constant 5 : index
    %c0_23 = arith.constant 0 : index
    %37 = vector.load %arg2[%c5, %c0_23] : memref<9x256xf32, #tpu.memory_space<vmem>>, vector<1x256xf32>
    %38 = vector.broadcast %37 : vector<1x256xf32> to vector<16x256xf32>
    %39 = arith.mulf %36, %38 : vector<16x256xf32>
    %40 = arith.truncf %39 : vector<16x256xf32> to vector<16x256xbf16>
    %c80 = arith.constant 80 : index
    %c0_24 = arith.constant 0 : index
    %41 = vector.load %arg7[%c80, %c0_24] : memref<144x256xbf16, #tpu.memory_space<vmem>>, vector<16x256xbf16>
    tpu.vector_store %arg7[%c80, %c0_24], %40 {strides = array<i32>} : memref<144x256xbf16, #tpu.memory_space<vmem>>, vector<16x256xbf16>,
    %c0_25 = arith.constant 0 : index
    %c0_26 = arith.constant 0 : index
    %c143 = arith.constant 143 : index
    %42 = vector.load %arg1[%c0_25, %c0_26, %c143] : memref<1x16x512xf32, #tpu.memory_space<vmem>>, vector<1x16x256xf32>
    %43 = vector.shape_cast %42 : vector<1x16x256xf32> to vector<16x256xf32>
    %c6 = arith.constant 6 : index
    %c0_27 = arith.constant 0 : index
    %44 = vector.load %arg2[%c6, %c0_27] : memref<9x256xf32, #tpu.memory_space<vmem>>, vector<1x256xf32>
    %45 = vector.broadcast %44 : vector<1x256xf32> to vector<16x256xf32>
    %46 = arith.mulf %43, %45 : vector<16x256xf32>
    %47 = arith.truncf %46 : vector<16x256xf32> to vector<16x256xbf16>
    %c96 = arith.constant 96 : index
    %c0_28 = arith.constant 0 : index
    %48 = vector.load %arg7[%c96, %c0_28] : memref<144x256xbf16, #tpu.memory_space<vmem>>, vector<16x256xbf16>
    tpu.vector_store %arg7[%c96, %c0_28], %47 {strides = array<i32>} : memref<144x256xbf16, #tpu.memory_space<vmem>>, vector<16x256xbf16>,
    %c0_29 = arith.constant 0 : index
    %c0_30 = arith.constant 0 : index
    %c144 = arith.constant 144 : index
    %49 = vector.load %arg1[%c0_29, %c0_30, %c144] : memref<1x16x512xf32, #tpu.memory_space<vmem>>, vector<1x16x256xf32>
    %50 = vector.shape_cast %49 : vector<1x16x256xf32> to vector<16x256xf32>
    %c7 = arith.constant 7 : index
    %c0_31 = arith.constant 0 : index
    %51 = vector.load %arg2[%c7, %c0_31] : memref<9x256xf32, #tpu.memory_space<vmem>>, vector<1x256xf32>
    %52 = vector.broadcast %51 : vector<1x256xf32> to vector<16x256xf32>
    %53 = arith.mulf %50, %52 : vector<16x256xf32>
    %54 = arith.truncf %53 : vector<16x256xf32> to vector<16x256xbf16>
    %c112_32 = arith.constant 112 : index
    %c0_33 = arith.constant 0 : index
    %55 = vector.load %arg7[%c112_32, %c0_33] : memref<144x256xbf16, #tpu.memory_space<vmem>>, vector<16x256xbf16>
    tpu.vector_store %arg7[%c112_32, %c0_33], %54 {strides = array<i32>} : memref<144x256xbf16, #tpu.memory_space<vmem>>, vector<16x256xbf16>,
    %c0_34 = arith.constant 0 : index
    %c0_35 = arith.constant 0 : index
    %c145 = arith.constant 145 : index
    %56 = vector.load %arg1[%c0_34, %c0_35, %c145] : memref<1x16x512xf32, #tpu.memory_space<vmem>>, vector<1x16x256xf32>
    %57 = vector.shape_cast %56 : vector<1x16x256xf32> to vector<16x256xf32>
    %c8 = arith.constant 8 : index
    %c0_36 = arith.constant 0 : index
    %58 = vector.load %arg2[%c8, %c0_36] : memref<9x256xf32, #tpu.memory_space<vmem>>, vector<1x256xf32>
    %59 = vector.broadcast %58 : vector<1x256xf32> to vector<16x256xf32>
    %60 = arith.mulf %57, %59 : vector<16x256xf32>
    %61 = arith.truncf %60 : vector<16x256xf32> to vector<16x256xbf16>
    %c128_37 = arith.constant 128 : index
    %c0_38 = arith.constant 0 : index
    %62 = vector.load %arg7[%c128_37, %c0_38] : memref<144x256xbf16, #tpu.memory_space<vmem>>, vector<16x256xbf16>
    tpu.vector_store %arg7[%c128_37, %c0_38], %61 {strides = array<i32>} : memref<144x256xbf16, #tpu.memory_space<vmem>>, vector<16x256xbf16>,
    %c0_39 = arith.constant 0 : index
    %c0_40 = arith.constant 0 : index
    %c128_41 = arith.constant 128 : index
    %63 = vector.load %arg1[%c0_39, %c0_40, %c128_41] : memref<1x16x512xf32, #tpu.memory_space<vmem>>, vector<1x8x256xf32>
    %64 = vector.shape_cast %63 : vector<1x8x256xf32> to vector<8x256xf32>
    %c0_42 = arith.constant 0 : index
    %c0_43 = arith.constant 0 : index
    %65 = vector.load %arg3[%c0_42, %c0_43] : memref<24x144xbf16, #tpu.memory_space<vmem>>, vector<24x144xbf16>
    %c0_44 = arith.constant 0 : index
    %c0_45 = arith.constant 0 : index
    %66 = vector.load %arg7[%c0_44, %c0_45] : memref<144x256xbf16, #tpu.memory_space<vmem>>, vector<144x256xbf16>
    %cst = arith.constant dense<0.000000e+00> : vector<24x256xf32>
    %67 = tpu.matmul %65, %66, %cst {dimension_numbers = #tpu.dot_dimension_numbers<[1], [0], [0], [1], [0, 0, 1, 1], [], []>} : vector<24x144xbf16>, vector<144x256xbf16>, vector<24x256xf32> -> vector<24x256xf32>
    %c0_46 = arith.constant 0 : index
    %c0_47 = arith.constant 0 : index
    %68 = vector.load %arg5[%c0_46, %c0_47] : memref<24x1xf32, #tpu.memory_space<vmem>>, vector<24x1xf32>
    %69 = vector.broadcast %68 : vector<24x1xf32> to vector<24x256xf32>
    %70 = arith.addf %67, %69 : vector<24x256xf32>
    %71 = vector.extract_strided_slice %70 {offsets = [0, 0], sizes = [8, 256], strides = [1, 1]} : vector<24x256xf32> to vector<8x256xf32>
    %cst_48 = arith.constant 0.000000e+00 : f32
    %72 = vector.broadcast %cst_48 : f32 to vector<8x256xf32>
    %73 = arith.subf %72, %71 : vector<8x256xf32>
    %74 = math.exp %73 : vector<8x256xf32>
    %cst_49 = arith.constant 1.000000e+00 : f32
    %75 = vector.broadcast %cst_49 : f32 to vector<8x256xf32>
    %76 = arith.addf %75, %74 : vector<8x256xf32>
    %cst_50 = arith.constant 1.000000e+00 : f32
    %77 = vector.broadcast %cst_50 : f32 to vector<8x256xf32>
    %78 = arith.divf %77, %76 : vector<8x256xf32>
    %79 = vector.extract_strided_slice %70 {offsets = [8, 0], sizes = [8, 256], strides = [1, 1]} : vector<24x256xf32> to vector<8x256xf32>
    %cst_51 = arith.constant 0.000000e+00 : f32
    %80 = vector.broadcast %cst_51 : f32 to vector<8x256xf32>
    %81 = arith.subf %80, %79 : vector<8x256xf32>
    %82 = math.exp %81 : vector<8x256xf32>
    %cst_52 = arith.constant 1.000000e+00 : f32
    %83 = vector.broadcast %cst_52 : f32 to vector<8x256xf32>
    %84 = arith.addf %83, %82 : vector<8x256xf32>
    %cst_53 = arith.constant 1.000000e+00 : f32
    %85 = vector.broadcast %cst_53 : f32 to vector<8x256xf32>
    %86 = arith.divf %85, %84 : vector<8x256xf32>
    %87 = arith.mulf %78, %64 : vector<8x256xf32>
    %cst_54 = arith.constant 0.000000e+00 : f32
    %88 = vector.broadcast %cst_54 : f32 to vector<8x128xf32>
    %c0_55 = arith.constant 0 : index
    %c0_56 = arith.constant 0 : index
    %89 = vector.load %arg9[%c0_55, %c0_56] : memref<8x512xf32, #tpu.memory_space<vmem>>, vector<8x128xf32>
    tpu.vector_store %arg9[%c0_55, %c0_56], %88 {strides = array<i32>} : memref<8x512xf32, #tpu.memory_space<vmem>>, vector<8x128xf32>,
    %c0_57 = arith.constant 0 : index
    %c384 = arith.constant 384 : index
    %90 = vector.load %arg9[%c0_57, %c384] : memref<8x512xf32, #tpu.memory_space<vmem>>, vector<8x128xf32>
    tpu.vector_store %arg9[%c0_57, %c384], %88 {strides = array<i32>} : memref<8x512xf32, #tpu.memory_space<vmem>>, vector<8x128xf32>,
    %c0_58 = arith.constant 0 : index
    %c128_59 = arith.constant 128 : index
    %91 = vector.load %arg9[%c0_58, %c128_59] : memref<8x512xf32, #tpu.memory_space<vmem>>, vector<8x256xf32>
    tpu.vector_store %arg9[%c0_58, %c128_59], %87 {strides = array<i32>} : memref<8x512xf32, #tpu.memory_space<vmem>>, vector<8x256xf32>,
    %c0_60 = arith.constant 0 : index
    %c111_61 = arith.constant 111 : index
    %92 = vector.load %arg9[%c0_60, %c111_61] : memref<8x512xf32, #tpu.memory_space<vmem>>, vector<8x256xf32>
    %c0_62 = arith.constant 0 : index
    %c0_63 = arith.constant 0 : index
    %93 = vector.load %arg2[%c0_62, %c0_63] : memref<9x256xf32, #tpu.memory_space<vmem>>, vector<1x256xf32>
    %94 = vector.broadcast %93 : vector<1x256xf32> to vector<8x256xf32>
    %95 = arith.mulf %92, %94 : vector<8x256xf32>
    %c0_64 = arith.constant 0 : index
    %c0_65 = arith.constant 0 : index
    %96 = vector.load %arg8[%c0_64, %c0_65] : memref<72x256xf32, #tpu.memory_space<vmem>>, vector<8x256xf32>
    tpu.vector_store %arg8[%c0_64, %c0_65], %95 {strides = array<i32>} : memref<72x256xf32, #tpu.memory_space<vmem>>, vector<8x256xf32>,
    %c0_66 = arith.constant 0 : index
    %c112_67 = arith.constant 112 : index
    %97 = vector.load %arg9[%c0_66, %c112_67] : memref<8x512xf32, #tpu.memory_space<vmem>>, vector<8x256xf32>
    %c1_68 = arith.constant 1 : index
    %c0_69 = arith.constant 0 : index
    %98 = vector.load %arg2[%c1_68, %c0_69] : memref<9x256xf32, #tpu.memory_space<vmem>>, vector<1x256xf32>
    %99 = vector.broadcast %98 : vector<1x256xf32> to vector<8x256xf32>
    %100 = arith.mulf %97, %99 : vector<8x256xf32>
    %c8_70 = arith.constant 8 : index
    %c0_71 = arith.constant 0 : index
    %101 = vector.load %arg8[%c8_70, %c0_71] : memref<72x256xf32, #tpu.memory_space<vmem>>, vector<8x256xf32>
    tpu.vector_store %arg8[%c8_70, %c0_71], %100 {strides = array<i32>} : memref<72x256xf32, #tpu.memory_space<vmem>>, vector<8x256xf32>,
    %c0_72 = arith.constant 0 : index
    %c113_73 = arith.constant 113 : index
    %102 = vector.load %arg9[%c0_72, %c113_73] : memref<8x512xf32, #tpu.memory_space<vmem>>, vector<8x256xf32>
    %c2_74 = arith.constant 2 : index
    %c0_75 = arith.constant 0 : index
    %103 = vector.load %arg2[%c2_74, %c0_75] : memref<9x256xf32, #tpu.memory_space<vmem>>, vector<1x256xf32>
    %104 = vector.broadcast %103 : vector<1x256xf32> to vector<8x256xf32>
    %105 = arith.mulf %102, %104 : vector<8x256xf32>
    %c16_76 = arith.constant 16 : index
    %c0_77 = arith.constant 0 : index
    %106 = vector.load %arg8[%c16_76, %c0_77] : memref<72x256xf32, #tpu.memory_space<vmem>>, vector<8x256xf32>
    tpu.vector_store %arg8[%c16_76, %c0_77], %105 {strides = array<i32>} : memref<72x256xf32, #tpu.memory_space<vmem>>, vector<8x256xf32>,
    %c0_78 = arith.constant 0 : index
    %c127_79 = arith.constant 127 : index
    %107 = vector.load %arg9[%c0_78, %c127_79] : memref<8x512xf32, #tpu.memory_space<vmem>>, vector<8x256xf32>
    %c3_80 = arith.constant 3 : index
    %c0_81 = arith.constant 0 : index
    %108 = vector.load %arg2[%c3_80, %c0_81] : memref<9x256xf32, #tpu.memory_space<vmem>>, vector<1x256xf32>
    %109 = vector.broadcast %108 : vector<1x256xf32> to vector<8x256xf32>
    %110 = arith.mulf %107, %109 : vector<8x256xf32>
    %c24 = arith.constant 24 : index
    %c0_82 = arith.constant 0 : index
    %111 = vector.load %arg8[%c24, %c0_82] : memref<72x256xf32, #tpu.memory_space<vmem>>, vector<8x256xf32>
    tpu.vector_store %arg8[%c24, %c0_82], %110 {strides = array<i32>} : memref<72x256xf32, #tpu.memory_space<vmem>>, vector<8x256xf32>,
    %c0_83 = arith.constant 0 : index
    %c128_84 = arith.constant 128 : index
    %112 = vector.load %arg9[%c0_83, %c128_84] : memref<8x512xf32, #tpu.memory_space<vmem>>, vector<8x256xf32>
    %c4_85 = arith.constant 4 : index
    %c0_86 = arith.constant 0 : index
    %113 = vector.load %arg2[%c4_85, %c0_86] : memref<9x256xf32, #tpu.memory_space<vmem>>, vector<1x256xf32>
    %114 = vector.broadcast %113 : vector<1x256xf32> to vector<8x256xf32>
    %115 = arith.mulf %112, %114 : vector<8x256xf32>
    %c32_87 = arith.constant 32 : index
    %c0_88 = arith.constant 0 : index
    %116 = vector.load %arg8[%c32_87, %c0_88] : memref<72x256xf32, #tpu.memory_space<vmem>>, vector<8x256xf32>
    tpu.vector_store %arg8[%c32_87, %c0_88], %115 {strides = array<i32>} : memref<72x256xf32, #tpu.memory_space<vmem>>, vector<8x256xf32>,
    %c0_89 = arith.constant 0 : index
    %c129_90 = arith.constant 129 : index
    %117 = vector.load %arg9[%c0_89, %c129_90] : memref<8x512xf32, #tpu.memory_space<vmem>>, vector<8x256xf32>
    %c5_91 = arith.constant 5 : index
    %c0_92 = arith.constant 0 : index
    %118 = vector.load %arg2[%c5_91, %c0_92] : memref<9x256xf32, #tpu.memory_space<vmem>>, vector<1x256xf32>
    %119 = vector.broadcast %118 : vector<1x256xf32> to vector<8x256xf32>
    %120 = arith.mulf %117, %119 : vector<8x256xf32>
    %c40 = arith.constant 40 : index
    %c0_93 = arith.constant 0 : index
    %121 = vector.load %arg8[%c40, %c0_93] : memref<72x256xf32, #tpu.memory_space<vmem>>, vector<8x256xf32>
    tpu.vector_store %arg8[%c40, %c0_93], %120 {strides = array<i32>} : memref<72x256xf32, #tpu.memory_space<vmem>>, vector<8x256xf32>,
    %c0_94 = arith.constant 0 : index
    %c143_95 = arith.constant 143 : index
    %122 = vector.load %arg9[%c0_94, %c143_95] : memref<8x512xf32, #tpu.memory_space<vmem>>, vector<8x256xf32>
    %c6_96 = arith.constant 6 : index
    %c0_97 = arith.constant 0 : index
    %123 = vector.load %arg2[%c6_96, %c0_97] : memref<9x256xf32, #tpu.memory_space<vmem>>, vector<1x256xf32>
    %124 = vector.broadcast %123 : vector<1x256xf32> to vector<8x256xf32>
    %125 = arith.mulf %122, %124 : vector<8x256xf32>
    %c48_98 = arith.constant 48 : index
    %c0_99 = arith.constant 0 : index
    %126 = vector.load %arg8[%c48_98, %c0_99] : memref<72x256xf32, #tpu.memory_space<vmem>>, vector<8x256xf32>
    tpu.vector_store %arg8[%c48_98, %c0_99], %125 {strides = array<i32>} : memref<72x256xf32, #tpu.memory_space<vmem>>, vector<8x256xf32>,
    %c0_100 = arith.constant 0 : index
    %c144_101 = arith.constant 144 : index
    %127 = vector.load %arg9[%c0_100, %c144_101] : memref<8x512xf32, #tpu.memory_space<vmem>>, vector<8x256xf32>
    %c7_102 = arith.constant 7 : index
    %c0_103 = arith.constant 0 : index
    %128 = vector.load %arg2[%c7_102, %c0_103] : memref<9x256xf32, #tpu.memory_space<vmem>>, vector<1x256xf32>
    %129 = vector.broadcast %128 : vector<1x256xf32> to vector<8x256xf32>
    %130 = arith.mulf %127, %129 : vector<8x256xf32>
    %c56 = arith.constant 56 : index
    %c0_104 = arith.constant 0 : index
    %131 = vector.load %arg8[%c56, %c0_104] : memref<72x256xf32, #tpu.memory_space<vmem>>, vector<8x256xf32>
    tpu.vector_store %arg8[%c56, %c0_104], %130 {strides = array<i32>} : memref<72x256xf32, #tpu.memory_space<vmem>>, vector<8x256xf32>,
    %c0_105 = arith.constant 0 : index
    %c145_106 = arith.constant 145 : index
    %132 = vector.load %arg9[%c0_105, %c145_106] : memref<8x512xf32, #tpu.memory_space<vmem>>, vector<8x256xf32>
    %c8_107 = arith.constant 8 : index
    %c0_108 = arith.constant 0 : index
    %133 = vector.load %arg2[%c8_107, %c0_108] : memref<9x256xf32, #tpu.memory_space<vmem>>, vector<1x256xf32>
    %134 = vector.broadcast %133 : vector<1x256xf32> to vector<8x256xf32>
    %135 = arith.mulf %132, %134 : vector<8x256xf32>
    %c64_109 = arith.constant 64 : index
    %c0_110 = arith.constant 0 : index
    %136 = vector.load %arg8[%c64_109, %c0_110] : memref<72x256xf32, #tpu.memory_space<vmem>>, vector<8x256xf32>
    tpu.vector_store %arg8[%c64_109, %c0_110], %135 {strides = array<i32>} : memref<72x256xf32, #tpu.memory_space<vmem>>, vector<8x256xf32>,
    %137 = vector.extract_strided_slice %70 {offsets = [16, 0], sizes = [8, 256], strides = [1, 1]} : vector<24x256xf32> to vector<8x256xf32>
    %c0_111 = arith.constant 0 : index
    %c0_112 = arith.constant 0 : index
    %138 = vector.load %arg4[%c0_111, %c0_112] : memref<8x72xbf16, #tpu.memory_space<vmem>>, vector<8x72xbf16>
    %c0_113 = arith.constant 0 : index
    %c0_114 = arith.constant 0 : index
    %139 = vector.load %arg8[%c0_113, %c0_114] : memref<72x256xf32, #tpu.memory_space<vmem>>, vector<72x256xf32>
    %140 = arith.truncf %139 : vector<72x256xf32> to vector<72x256xbf16>
    %cst_115 = arith.constant dense<0.000000e+00> : vector<8x256xf32>
    %141 = tpu.matmul %138, %140, %cst_115 {dimension_numbers = #tpu.dot_dimension_numbers<[1], [0], [0], [1], [0, 0, 1, 1], [], []>} : vector<8x72xbf16>, vector<72x256xbf16>, vector<8x256xf32> -> vector<8x256xf32>
    %142 = arith.addf %137, %141 : vector<8x256xf32>
    %143 = math.tanh %142 : vector<8x256xf32>
    %144 = arith.mulf %86, %64 : vector<8x256xf32>
    %cst_116 = arith.constant 1.000000e+00 : f32
    %145 = vector.broadcast %cst_116 : f32 to vector<8x256xf32>
    %146 = arith.subf %145, %86 : vector<8x256xf32>
    %147 = arith.mulf %146, %143 : vector<8x256xf32>
    %148 = arith.addf %144, %147 : vector<8x256xf32>
    %c0_117 = arith.constant 0 : index
    %c0_118 = arith.constant 0 : index
    %c0_119 = arith.constant 0 : index
    %149 = vector.load %arg6[%c0_117, %c0_118, %c0_119] : memref<1x8x256xf32, #tpu.memory_space<vmem>>, vector<1x8x256xf32>
    %150 = vector.shape_cast %149 : vector<1x8x256xf32> to vector<8x256xf32>
    %151 = vector.shape_cast %148 : vector<8x256xf32> to vector<1x8x256xf32>
    tpu.vector_store %arg6[%c0_117, %c0_118, %c0_119], %151 {strides = array<i32>} : memref<1x8x256xf32, #tpu.memory_space<vmem>>, vector<1x8x256xf32>,
    return
  }
  func.func @transform_0(%arg0: i32) -> (i32, i32, i32) {
    %c0_i32 = arith.constant 0 : i32
    %c0_i32_0 = arith.constant 0 : i32
    %c0_i32_1 = arith.constant 0 : i32
    return %arg0, %c0_i32, %c0_i32_0 : i32, i32, i32
  }
  func.func @transform_1(%arg0: i32) -> (i32, i32) {
    %c0_i32 = arith.constant 0 : i32
    %c0_i32_0 = arith.constant 0 : i32
    %c0_i32_1 = arith.constant 0 : i32
    return %c0_i32, %c0_i32_0 : i32, i32
  }
  func.func @transform_2(%arg0: i32) -> (i32, i32) {
    %c0_i32 = arith.constant 0 : i32
    %c0_i32_0 = arith.constant 0 : i32
    %c0_i32_1 = arith.constant 0 : i32
    return %c0_i32, %c0_i32_0 : i32, i32
  }
  func.func @transform_3(%arg0: i32) -> (i32, i32) {
    %c0_i32 = arith.constant 0 : i32
    %c0_i32_0 = arith.constant 0 : i32
    %c0_i32_1 = arith.constant 0 : i32
    return %c0_i32, %c0_i32_0 : i32, i32
  }
  func.func @transform_4(%arg0: i32) -> (i32, i32) {
    %c0_i32 = arith.constant 0 : i32
    %c0_i32_0 = arith.constant 0 : i32
    %c0_i32_1 = arith.constant 0 : i32
    return %c0_i32, %c0_i32_0 : i32, i32
  }
  func.func @transform_5(%arg0: i32) -> (i32, i32, i32) {
    %c0_i32 = arith.constant 0 : i32
    %c0_i32_0 = arith.constant 0 : i32
    %c0_i32_1 = arith.constant 0 : i32
    return %arg0, %c0_i32, %c0_i32_0 : i32, i32, i32
  }
}

</mosaic_0001>

<llo_original>
// kernel: tpu_custom_call.1
$region0: #{tpu_custom_call.1}
  #allocation0 [shape = 'u32[]', space=smem, size = 0x4, offset = 0x4, fixed_abs, tag = 'smem constant byte address 0x4 - core index']
  #allocation1 [shape = 'u32[144,128]{1,0:T(1,128)}', space=vmem, size = 0x12000, scoped, tag = 'internal scratch']
  #allocation2 [shape = 'bf16[144,256]{1,0:T(8,128)(2,1)}', space=vmem, size = 0x12000, scoped, tag = 'scratch operand']
  #allocation3 [shape = 'f32[72,256]{1,0:T(8,128)}', space=vmem, size = 0x12000, scoped, tag = 'scratch operand']
  #allocation4 [shape = 'f32[8,512]{1,0:T(8,128)}', space=vmem, size = 0x4000, scoped, tag = 'scratch operand']
  %s0 = inlined_call_operand.hbm [shape: f32[2,16,512], index: 0, kind: input, shape index: {}]
  %s1 = inlined_call_operand.hbm [shape: f32[9,256], index: 1, kind: input, shape index: {}]
  %s2 = inlined_call_operand.vmem [shape: bf16[24,144], index: 2, kind: input, shape index: {}]
  %s3 = inlined_call_operand.vmem [shape: bf16[8,72], index: 3, kind: input, shape index: {}]
  %s4 = inlined_call_operand.vmem [shape: f32[24,1], index: 4, kind: input, shape index: {}]
  %s5 = inlined_call_operand.hbm [shape: f32[2,8,256], index: 5, kind: output, shape index: {}]
  %s6 = sld [smem:[#allocation0]]
  $region61: #{tpu_custom_call.1} parent=0
    _
  %s8 = ssub.s32 1, %s6
  %s9 = scalar_select 0, %s8, %s6
  $region1: #{tpu_custom_call.1} parent=0
    #allocation5 [shape = 'u8[65536]{0}', space=vmem, size = 0x10000, scoped, tag = 'input window, operand 0']
    #allocation6 [shape = 's32[2]{0}', space=sflag, size = 0x8, scoped, tag = 'scoped memory for tpu_custom_call.1']
    #allocation7 [shape = 's32[2]{0}', space=sflag, size = 0x8, scoped, tag = 'scoped memory for tpu_custom_call.1']
    #allocation8 [shape = 'u8[16384]{0}', space=vmem, size = 0x4000, scoped, tag = 'input window, operand 1, single buffered']
    #allocation9 [shape = 's32[1]{0}', space=sflag, size = 0x4, scoped, tag = 'scoped memory for tpu_custom_call.1']
    #allocation10 [shape = 'u8[16384]{0}', space=vmem, size = 0x4000, scoped, tag = 'output window, operand 0']
    %10 = vsyncpa [#allocation6], 0
    %s11 = scalar_lea.sflag [#allocation6], 1
    %12 = vsyncpa %s11, 0
    %13 = vsyncpa [#allocation9], 0
    %14 = vsyncpa [#allocation7], 0
    %s15 = scalar_lea.sflag [#allocation7], 1
    %16 = vsyncpa %s15, 0
    loop: start=0, step=1, limit=4
    $region2: #{tpu_custom_call.1} parent=1 // loop_pre_header
      _
    $region3: #{tpu_custom_call.1} parent=1 // loop_header
      %s18 = sphi 0, %s22
      %p19 = scmp.ge.s32.totalorder %s18, 4
      %s28 = sphi 0, %s30
      %s31 = sphi 0, %s28
      %s32 = sphi 0, %s31
      %s48 = sphi 0, %s32
      %s52 = sphi 0, %s52
      %s54 = sphi 0, %s52
      %s55 = sphi 0, %s54
      %s69 = sphi 0, %s55
      %s73 = sphi 0, %s73
      %s75 = sphi 0, %s73
      %s76 = sphi 0, %s75
      %s90 = sphi 0, %s76
      %s94 = sphi 0, %s94
      %s96 = sphi 0, %s94
      %s97 = sphi 0, %s96
      %s111 = sphi 0, %s97
      %s115 = sphi 0, %s115
      %s117 = sphi 0, %s115
      %s118 = sphi 0, %s117
      %s132 = sphi 0, %s118
      %s138 = sphi 0, %s140
      %s141 = sphi 0, %s138
      %s142 = sphi 0, %s141
      %s158 = sphi 0, %s142
    $region4: #{tpu_custom_call.1} parent=1 // loop_header_branch
      %21 = sbr.rel (%p19) target = $region8
    $region5: #{tpu_custom_call.1} parent=1 // loop_body
      %s23 = ssub.s32 %s18, 1
      %s24 = ssub.s32 %s18, 2
      %s25 = sadd.s32 %s18, 1
      %s26 = ssub.s32 %s18, %s25
      %p27 = scmp.eq.s32.totalorder %s26, 0
      %s29 = sadd.s32 %s28, 1
      %s30 = scalar_select %p27, %s28, %s29
      %p33 = pneg %p27
      %p34 = scmp.eq.s32.totalorder %s18, 1
      %p35 = por %p33, %p34
      %p36 = scmp.ne.s32.totalorder %s28, %s31
      %p37 = scmp.eq.s32.totalorder %s18, 0
      %p38 = por %p36, %p37
      %p39 = scmp.ne.s32.totalorder %s28, %s31
      %p40 = scmp.eq.s32.totalorder %s23, 1
      %p41 = por %p39, %p40
      %p42 = scmp.ne.s32.totalorder %s31, %s32
      %p43 = scmp.eq.s32.totalorder %s23, 0
      %p44 = por %p42, %p43
      %p45 = scmp.ne.s32.totalorder %s31, %s32
      %p46 = scmp.eq.s32.totalorder %s24, 1
      %p47 = por %p45, %p46
      %p49 = scmp.ne.s32.totalorder %s32, %s48
      %p50 = scmp.eq.s32.totalorder %s24, 0
      %p51 = por %p49, %p50
      %s53 = sadd.s32 %s52, 1
      %p56 = scmp.eq.s32.totalorder %s18, 1
      %p57 = scmp.ne.s32.totalorder %s52, %s54
      %p58 = scmp.eq.s32.totalorder %s18, 0
      %p59 = por %p57, %p58
      %p60 = scmp.ne.s32.totalorder %s52, %s54
      %p61 = scmp.eq.s32.totalorder %s23, 1
      %p62 = por %p60, %p61
      %p63 = scmp.ne.s32.totalorder %s54, %s55
      %p64 = scmp.eq.s32.totalorder %s23, 0
      %p65 = por %p63, %p64
      %p66 = scmp.ne.s32.totalorder %s54, %s55
      %p67 = scmp.eq.s32.totalorder %s24, 1
      %p68 = por %p66, %p67
      %p70 = scmp.ne.s32.totalorder %s55, %s69
      %p71 = scmp.eq.s32.totalorder %s24, 0
      %p72 = por %p70, %p71
      %s74 = sadd.s32 %s73, 1
      %p77 = scmp.eq.s32.totalorder %s18, 1
      %p78 = scmp.ne.s32.totalorder %s73, %s75
      %p79 = scmp.eq.s32.totalorder %s18, 0
      %p80 = por %p78, %p79
      %p81 = scmp.ne.s32.totalorder %s73, %s75
      %p82 = scmp.eq.s32.totalorder %s23, 1
      %p83 = por %p81, %p82
      %p84 = scmp.ne.s32.totalorder %s75, %s76
      %p85 = scmp.eq.s32.totalorder %s23, 0
      %p86 = por %p84, %p85
      %p87 = scmp.ne.s32.totalorder %s75, %s76
      %p88 = scmp.eq.s32.totalorder %s24, 1
      %p89 = por %p87, %p88
      %p91 = scmp.ne.s32.totalorder %s76, %s90
      %p92 = scmp.eq.s32.totalorder %s24, 0
      %p93 = por %p91, %p92
      %s95 = sadd.s32 %s94, 1
      %p98 = scmp.eq.s32.totalorder %s18, 1
      %p99 = scmp.ne.s32.totalorder %s94, %s96
      %p100 = scmp.eq.s32.totalorder %s18, 0
      %p101 = por %p99, %p100
      %p102 = scmp.ne.s32.totalorder %s94, %s96
      %p103 = scmp.eq.s32.totalorder %s23, 1
      %p104 = por %p102, %p103
      %p105 = scmp.ne.s32.totalorder %s96, %s97
      %p106 = scmp.eq.s32.totalorder %s23, 0
      %p107 = por %p105, %p106
      %p108 = scmp.ne.s32.totalorder %s96, %s97
      %p109 = scmp.eq.s32.totalorder %s24, 1
      %p110 = por %p108, %p109
      %p112 = scmp.ne.s32.totalorder %s97, %s111
      %p113 = scmp.eq.s32.totalorder %s24, 0
      %p114 = por %p112, %p113
      %s116 = sadd.s32 %s115, 1
      %p119 = scmp.eq.s32.totalorder %s18, 1
      %p120 = scmp.ne.s32.totalorder %s115, %s117
      %p121 = scmp.eq.s32.totalorder %s18, 0
      %p122 = por %p120, %p121
      %p123 = scmp.ne.s32.totalorder %s115, %s117
      %p124 = scmp.eq.s32.totalorder %s23, 1
      %p125 = por %p123, %p124
      %p126 = scmp.ne.s32.totalorder %s117, %s118
      %p127 = scmp.eq.s32.totalorder %s23, 0
      %p128 = por %p126, %p127
      %p129 = scmp.ne.s32.totalorder %s117, %s118
      %p130 = scmp.eq.s32.totalorder %s24, 1
      %p131 = por %p129, %p130
      %p133 = scmp.ne.s32.totalorder %s118, %s132
      %p134 = scmp.eq.s32.totalorder %s24, 0
      %p135 = por %p133, %p134
      %s136 = ssub.s32 %s18, %s25
      %p137 = scmp.eq.s32.totalorder %s136, 0
      %s139 = sadd.s32 %s138, 1
      %s140 = scalar_select %p137, %s138, %s139
      %p143 = pneg %p137
      %p144 = scmp.eq.s32.totalorder %s18, 1
      %p145 = por %p143, %p144
      %p146 = scmp.ne.s32.totalorder %s138, %s141
      %p147 = scmp.eq.s32.totalorder %s18, 0
      %p148 = por %p146, %p147
      %p149 = scmp.ne.s32.totalorder %s138, %s141
      %p150 = scmp.eq.s32.totalorder %s23, 1
      %p151 = por %p149, %p150
      %p152 = scmp.ne.s32.totalorder %s141, %s142
      %p153 = scmp.eq.s32.totalorder %s23, 0
      %p154 = por %p152, %p153
      %p155 = scmp.ne.s32.totalorder %s141, %s142
      %p156 = scmp.eq.s32.totalorder %s24, 1
      %p157 = por %p155, %p156
      %p159 = scmp.ne.s32.totalorder %s142, %s158
      %p160 = scmp.eq.s32.totalorder %s24, 0
      %p161 = por %p159, %p160
      %p162 = scmp.le.s32.totalorder 1, %s18
      %p163 = scmp.lt.s32.totalorder %s18, 3
      %p164 = pnand %p162, %p163
      %p165 = pneg %p164
      // Predicated region
      $region9: #{tpu_custom_call.1} parent=5 // pred_check
        _
      $region10: #{tpu_custom_call.1} parent=5 // pred_check_branch
        %167 = sbr.rel (%p164) target = $region12
      $region11: #{tpu_custom_call.1} parent=5 // pred_region
        %s168 = ssub.s32 %s18, 1
        // Predicated region
        $region13: #{tpu_custom_call.1} parent=11 // pred_check
          %p169 = pneg %p65
        $region14: #{tpu_custom_call.1} parent=11 // pred_check_branch
          %171 = sbr.rel (%p169) target = $region16
        $region15: #{tpu_custom_call.1} parent=11 // pred_region
          %s173 = ssub.s32 512, 512
          %174 = vsyncadd [#allocation9], %s173
          %s175 = sshll.u32 [#allocation8], 4
          %s176 = int_to_ptr.vmem [resolvable:$true] %s175
          %181 = dma.hbm_to_vmem [thread:$0]  %s1, 512, %s176, [#allocation9], 256, 256, 16
        $region16: #{tpu_custom_call.1} parent=11 // pred_fallthru
          _
        // Predicated region
        $region17: #{tpu_custom_call.1} parent=11 // pred_check
          %p182 = pneg %p86
        $region18: #{tpu_custom_call.1} parent=11 // pred_check_branch
          %184 = sbr.rel (%p182) target = $region20
        $region19: #{tpu_custom_call.1} parent=11 // pred_region
          _
        $region20: #{tpu_custom_call.1} parent=11 // pred_fallthru
          _
        // Predicated region
        $region21: #{tpu_custom_call.1} parent=11 // pred_check
          %p185 = pneg %p107
        $region22: #{tpu_custom_call.1} parent=11 // pred_check_branch
          %187 = sbr.rel (%p185) target = $region24
        $region23: #{tpu_custom_call.1} parent=11 // pred_region
          _
        $region24: #{tpu_custom_call.1} parent=11 // pred_fallthru
          _
        // Predicated region
        $region25: #{tpu_custom_call.1} parent=11 // pred_check
          %p188 = pneg %p128
        $region26: #{tpu_custom_call.1} parent=11 // pred_check_branch
          %190 = sbr.rel (%p188) target = $region28
        $region27: #{tpu_custom_call.1} parent=11 // pred_region
          _
        $region28: #{tpu_custom_call.1} parent=11 // pred_fallthru
          _
      $region12: #{tpu_custom_call.1} parent=5 // pred_fallthru
        _
      %p191 = scmp.lt.s32.totalorder %s18, 2
      // Predicated region
      $region29: #{tpu_custom_call.1} parent=5 // pred_check
        %p192 = pneg %p191
      $region30: #{tpu_custom_call.1} parent=5 // pred_check_branch
        %194 = sbr.rel (%p192) target = $region32
      $region31: #{tpu_custom_call.1} parent=5 // pred_region
        // Predicated region
        $region33: #{tpu_custom_call.1} parent=31 // pred_check
          %p195 = pneg %p38
        $region34: #{tpu_custom_call.1} parent=31 // pred_check_branch
          %197 = sbr.rel (%p195) target = $region36
        $region35: #{tpu_custom_call.1} parent=31 // pred_region
          %s198 = sand.u32 %s28, 1
          %s199 = scalar_lea.sflag [#allocation6], %s198
          %s200 = sand.u32 %s28, 1
          %s201 = smul.addr %s200, 64
          %s202 = scalar_lea.vmem [#allocation5], %s201
          %s204 = ssub.s32 1024, 1024
          %205 = vsyncadd %s199, %s204
          %s206 = smul.addr %s18, 8
          %s207 = smul.addr %s206, 128
          %s208 = scalar_lea.hbm %s0, %s207
          %s209 = sshll.u32 %s202, 4
          %s210 = int_to_ptr.vmem [resolvable:$true] %s209
          %215 = dma.hbm_to_vmem [thread:$0]  %s208, 1024, %s210, %s199, 512, 512, 32
        $region36: #{tpu_custom_call.1} parent=31 // pred_fallthru
          _
      $region32: #{tpu_custom_call.1} parent=5 // pred_fallthru
        _
      %p216 = scmp.le.s32.totalorder 1, %s18
      %p217 = scmp.lt.s32.totalorder %s18, 3
      %p218 = pnand %p216, %p217
      %p219 = pneg %p218
      // Predicated region
      $region37: #{tpu_custom_call.1} parent=5 // pred_check
        _
      $region38: #{tpu_custom_call.1} parent=5 // pred_check_branch
        %221 = sbr.rel (%p218) target = $region40
      $region39: #{tpu_custom_call.1} parent=5 // pred_region
        %s222 = ssub.s32 %s18, 1
        %s223 = sand.u32 %s31, 1
        %s224 = scalar_lea.sflag [#allocation6], %s223
        %s225 = sand.u32 %s31, 1
        %s226 = smul.addr %s225, 64
        %s227 = scalar_lea.vmem [#allocation5], %s226
        // Predicated region
        $region41: #{tpu_custom_call.1} parent=39 // pred_check
          %p228 = pneg %p44
        $region42: #{tpu_custom_call.1} parent=39 // pred_check_branch
          %230 = sbr.rel (%p228) target = $region44
        $region43: #{tpu_custom_call.1} parent=39 // pred_region
          %231 = dma.done %s224, 1024
        $region44: #{tpu_custom_call.1} parent=39 // pred_fallthru
          _
        // Predicated region
        $region45: #{tpu_custom_call.1} parent=39 // pred_check
          %p232 = pneg %p65
        $region46: #{tpu_custom_call.1} parent=39 // pred_check_branch
          %234 = sbr.rel (%p232) target = $region48
        $region47: #{tpu_custom_call.1} parent=39 // pred_region
          %235 = dma.done [#allocation9], 512
        $region48: #{tpu_custom_call.1} parent=39 // pred_fallthru
          _
        %s236 = sand.u32 %s31, 1
        %s237 = scalar_lea.sflag [#allocation6], %s236
        %s238 = sand.u32 %s31, 1
        %s239 = smul.addr %s238, 64
        %s240 = scalar_lea.vmem [#allocation5], %s239
        %p241 = pneg %p44
        %p242 = pneg %p41
        %p243 = pneg %p65
        %p244 = pneg %p62
        %p245 = pneg %p86
        %p246 = pneg %p83
        %p247 = pneg %p107
        %p248 = pneg %p104
        %p249 = pneg %p128
        %p250 = pneg %p125
        %p251 = pneg %p154
        %p252 = pneg %p151
        %s253 = sand.u32 %s141, 1
        %s254 = scalar_lea.sflag [#allocation7], %s253
        %s255 = sand.u32 %s141, 1
        %s256 = smul.addr %s255, 16
        %s257 = scalar_lea.vmem [#allocation10], %s256
        %v259 = vld [vmem:[%s227] sm:$0xff]
        %v260 = vld [vmem:[%s227 + $0x8] sm:$0xff]
        %v261 = vld [vmem:[%s227 + $0x10] sm:$0xff]
        %v262 = vld [vmem:[%s227 + $0x20] sm:$0xff]
        %v263 = vld [vmem:[%s227 + $0x28] sm:$0xff]
        %v264 = vld [vmem:[%s227 + $0x30] sm:$0xff]
        %v265 = vld [vmem:[#allocation8] ss:$8 sm:$0x3]
        %v267 = vlaneseq
        %v268 = vshrl.u32 %v267, 7
        %v269 = vsub.s32 0, %v268
        %v270 = vrot.slane %v265, %v269
        %v271 = vlaneseq
        %v272 = vshrl.u32 %v271, 7
        %v273 = vsub.s32 1, %v272
        %v274 = vrot.slane %v265, %v273
        %275 = vrot.lane.b32.xlu0 %v270, 111
        %v276 = vpop.permute.xlu0 %275
        %277 = vrot.lane.b32.xlu0 %v274, 111
        %v278 = vpop.permute.xlu0 %277
        %vm279 = vcmask 908288
        %v280 = vsel %vm279, %v276, %v278
        %v284 = vmul.f32 %v259, %v276
        %v285 = vmul.f32 %v260, %v280
        %v286 = vmul.f32 %v261, %v278
        %v287 = vmul.f32 %v262, %v276
        %v288 = vmul.f32 %v263, %v280
        %v289 = vmul.f32 %v264, %v278
        %v290 = vpack.c.bf16 %v287, %v284
        %v291 = vpack.c.bf16 %v288, %v285
        %v292 = vpack.c.bf16 %v289, %v286
        %v296 = vunpack.c.l.b16 %v290
        %v297 = vunpack.c.l.b16 %v291
        %v298 = vunpack.c.l.b16 %v292
        %v299 = vunpack.c.h.b16 %v290
        %v300 = vunpack.c.h.b16 %v291
        %v301 = vunpack.c.h.b16 %v292
        %v302 = vpack.c.b16 %v297, %v296
        %v303 = vpack.c.b16 %v298, %v298
        %v304 = vpack.c.b16 %v300, %v299
        %v305 = vpack.c.b16 %v301, %v301
        %306 = vrot.lane.b32.xlu0 %v302, 17
        %v307 = vpop.permute.xlu0 %306
        %308 = vrot.lane.b32.xlu0 %v303, 17
        %v309 = vpop.permute.xlu0 %308
        %310 = vrot.lane.b32.xlu0 %v304, 17
        %v311 = vpop.permute.xlu0 %310
        %312 = vrot.lane.b32.xlu0 %v305, 17
        %v313 = vpop.permute.xlu0 %312
        %v314 = vrot.slane %v307, 4
        %v315 = vrot.slane %v309, 4
        %v316 = vrot.slane %v311, 4
        %v317 = vrot.slane %v313, 4
        %vm318 = vcmask 1043456
        %v319 = vsel %vm318, %v314, %v315
        %vm320 = vcmask 138240
        %v321 = vsel %vm320, %v307, %v319
        %v322 = vsel %vm318, %v316, %v317
        %v323 = vsel %vm320, %v311, %v322
        %326 = vst [vmem:[#allocation2] sm:$0xff] %v321
        %327 = vst [vmem:[#allocation2 + $0x8] sm:$0xff] %v323
        %v328 = vld [vmem:[%s227] sm:$0xff]
        %v329 = vld [vmem:[%s227 + $0x8] sm:$0xff]
        %v330 = vld [vmem:[%s227 + $0x10] sm:$0xff]
        %v331 = vld [vmem:[%s227 + $0x20] sm:$0xff]
        %v332 = vld [vmem:[%s227 + $0x28] sm:$0xff]
        %v333 = vld [vmem:[%s227 + $0x30] sm:$0xff]
        %s334 = scalar_lea.vmem [#allocation8], 1
        %v335 = vld [vmem:[%s334] ss:$8 sm:$0x3]
        %v337 = vlaneseq
        %v338 = vshrl.u32 %v337, 7
        %v339 = vsub.s32 0, %v338
        %v340 = vrot.slane %v335, %v339
        %v341 = vlaneseq
        %v342 = vshrl.u32 %v341, 7
        %v343 = vsub.s32 1, %v342
        %v344 = vrot.slane %v335, %v343
        %345 = vrot.lane.b32.xlu0 %v340, 112
        %v346 = vpop.permute.xlu0 %345
        %347 = vrot.lane.b32.xlu0 %v344, 112
        %v348 = vpop.permute.xlu0 %347
        %vm349 = vcmask 916480
        %v350 = vsel %vm349, %v346, %v348
        %v354 = vmul.f32 %v328, %v346
        %v355 = vmul.f32 %v329, %v350
        %v356 = vmul.f32 %v330, %v348
        %v357 = vmul.f32 %v331, %v346
        %v358 = vmul.f32 %v332, %v350
        %v359 = vmul.f32 %v333, %v348
        %v360 = vpack.c.bf16 %v357, %v354
        %v361 = vpack.c.bf16 %v358, %v355
        %v362 = vpack.c.bf16 %v359, %v356
        %v366 = vunpack.c.l.b16 %v360
        %v367 = vunpack.c.l.b16 %v361
        %v368 = vunpack.c.l.b16 %v362
        %v369 = vunpack.c.h.b16 %v360
        %v370 = vunpack.c.h.b16 %v361
        %v371 = vunpack.c.h.b16 %v362
        %v372 = vpack.c.b16 %v367, %v366
        %v373 = vpack.c.b16 %v368, %v368
        %v374 = vpack.c.b16 %v370, %v369
        %v375 = vpack.c.b16 %v371, %v371
        %376 = vrot.lane.b32.xlu0 %v372, 16
        %v377 = vpop.permute.xlu0 %376
        %378 = vrot.lane.b32.xlu0 %v373, 16
        %v379 = vpop.permute.xlu0 %378
        %380 = vrot.lane.b32.xlu0 %v374, 16
        %v381 = vpop.permute.xlu0 %380
        %382 = vrot.lane.b32.xlu0 %v375, 16
        %v383 = vpop.permute.xlu0 %382
        %v384 = vrot.slane %v377, 4
        %v385 = vrot.slane %v379, 4
        %v386 = vrot.slane %v381, 4
        %v387 = vrot.slane %v383, 4
        %v388 = vsel %vm318, %v384, %v385
        %vm389 = vcmask 130048
        %v390 = vsel %vm389, %v377, %v388
        %v391 = vsel %vm318, %v386, %v387
        %v392 = vsel %vm389, %v381, %v391
        %395 = vst [vmem:[#allocation2 + $0x10] sm:$0xff] %v390
        %396 = vst [vmem:[#allocation2 + $0x18] sm:$0xff] %v392
        %v397 = vld [vmem:[%s227] sm:$0xff]
        %v398 = vld [vmem:[%s227 + $0x8] sm:$0xff]
        %v399 = vld [vmem:[%s227 + $0x10] sm:$0xff]
        %v400 = vld [vmem:[%s227 + $0x20] sm:$0xff]
        %v401 = vld [vmem:[%s227 + $0x28] sm:$0xff]
        %v402 = vld [vmem:[%s227 + $0x30] sm:$0xff]
        %s403 = scalar_lea.vmem [#allocation8], 2
        %v404 = vld [vmem:[%s403] ss:$8 sm:$0x3]
        %v406 = vlaneseq
        %v407 = vshrl.u32 %v406, 7
        %v408 = vsub.s32 0, %v407
        %v409 = vrot.slane %v404, %v408
        %v410 = vlaneseq
        %v411 = vshrl.u32 %v410, 7
        %v412 = vsub.s32 1, %v411
        %v413 = vrot.slane %v404, %v412
        %414 = vrot.lane.b32.xlu0 %v409, 113
        %v415 = vpop.permute.xlu0 %414
        %416 = vrot.lane.b32.xlu0 %v413, 113
        %v417 = vpop.permute.xlu0 %416
        %vm418 = vcmask 924672
        %v419 = vsel %vm418, %v415, %v417
        %v423 = vmul.f32 %v397, %v415
        %v424 = vmul.f32 %v398, %v419
        %v425 = vmul.f32 %v399, %v417
        %v426 = vmul.f32 %v400, %v415
        %v427 = vmul.f32 %v401, %v419
        %v428 = vmul.f32 %v402, %v417
        %v429 = vpack.c.bf16 %v426, %v423
        %v430 = vpack.c.bf16 %v427, %v424
        %v431 = vpack.c.bf16 %v428, %v425
        %v435 = vunpack.c.l.b16 %v429
        %v436 = vunpack.c.l.b16 %v430
        %v437 = vunpack.c.l.b16 %v431
        %v438 = vunpack.c.h.b16 %v429
        %v439 = vunpack.c.h.b16 %v430
        %v440 = vunpack.c.h.b16 %v431
        %v441 = vpack.c.b16 %v436, %v435
        %v442 = vpack.c.b16 %v437, %v437
        %v443 = vpack.c.b16 %v439, %v438
        %v444 = vpack.c.b16 %v440, %v440
        %445 = vrot.lane.b32.xlu0 %v441, 15
        %v446 = vpop.permute.xlu0 %445
        %447 = vrot.lane.b32.xlu0 %v442, 15
        %v448 = vpop.permute.xlu0 %447
        %449 = vrot.lane.b32.xlu0 %v443, 15
        %v450 = vpop.permute.xlu0 %449
        %451 = vrot.lane.b32.xlu0 %v444, 15
        %v452 = vpop.permute.xlu0 %451
        %v453 = vrot.slane %v446, 4
        %v454 = vrot.slane %v448, 4
        %v455 = vrot.slane %v450, 4
        %v456 = vrot.slane %v452, 4
        %v457 = vsel %vm318, %v453, %v454
        %vm458 = vcmask 121856
        %v459 = vsel %vm458, %v446, %v457
        %v460 = vsel %vm318, %v455, %v456
        %v461 = vsel %vm458, %v450, %v460
        %464 = vst [vmem:[#allocation2 + $0x20] sm:$0xff] %v459
        %465 = vst [vmem:[#allocation2 + $0x28] sm:$0xff] %v461
        %v466 = vld [vmem:[%s227] sm:$0xff]
        %v467 = vld [vmem:[%s227 + $0x8] sm:$0xff]
        %v468 = vld [vmem:[%s227 + $0x10] sm:$0xff]
        %v469 = vld [vmem:[%s227 + $0x20] sm:$0xff]
        %v470 = vld [vmem:[%s227 + $0x28] sm:$0xff]
        %v471 = vld [vmem:[%s227 + $0x30] sm:$0xff]
        %s472 = scalar_lea.vmem [#allocation8], 3
        %v473 = vld [vmem:[%s472] ss:$8 sm:$0x3]
        %v475 = vlaneseq
        %v476 = vshrl.u32 %v475, 7
        %v477 = vsub.s32 0, %v476
        %v478 = vrot.slane %v473, %v477
        %v479 = vlaneseq
        %v480 = vshrl.u32 %v479, 7
        %v481 = vsub.s32 1, %v480
        %v482 = vrot.slane %v473, %v481
        %483 = vrot.lane.b32.xlu0 %v478, 127
        %v484 = vpop.permute.xlu0 %483
        %485 = vrot.lane.b32.xlu0 %v482, 127
        %v486 = vpop.permute.xlu0 %485
        %vm487 = vcmask 1039360
        %v488 = vsel %vm487, %v484, %v486
        %v492 = vmul.f32 %v466, %v484
        %v493 = vmul.f32 %v467, %v488
        %v494 = vmul.f32 %v468, %v486
        %v495 = vmul.f32 %v469, %v484
        %v496 = vmul.f32 %v470, %v488
        %v497 = vmul.f32 %v471, %v486
        %v498 = vpack.c.bf16 %v495, %v492
        %v499 = vpack.c.bf16 %v496, %v493
        %v500 = vpack.c.bf16 %v497, %v494
        %v504 = vunpack.c.l.b16 %v498
        %v505 = vunpack.c.l.b16 %v499
        %v506 = vunpack.c.l.b16 %v500
        %v507 = vunpack.c.h.b16 %v498
        %v508 = vunpack.c.h.b16 %v499
        %v509 = vunpack.c.h.b16 %v500
        %v510 = vpack.c.b16 %v505, %v504
        %v511 = vpack.c.b16 %v506, %v506
        %v512 = vpack.c.b16 %v508, %v507
        %v513 = vpack.c.b16 %v509, %v509
        %514 = vrot.lane.b32.xlu0 %v510, 1
        %v515 = vpop.permute.xlu0 %514
        %516 = vrot.lane.b32.xlu0 %v511, 1
        %v517 = vpop.permute.xlu0 %516
        %518 = vrot.lane.b32.xlu0 %v512, 1
        %v519 = vpop.permute.xlu0 %518
        %520 = vrot.lane.b32.xlu0 %v513, 1
        %v521 = vpop.permute.xlu0 %520
        %v522 = vrot.slane %v515, 4
        %v523 = vrot.slane %v517, 4
        %v524 = vrot.slane %v519, 4
        %v525 = vrot.slane %v521, 4
        %v526 = vsel %vm318, %v522, %v523
        %vm527 = vcmask 7168
        %v528 = vsel %vm527, %v515, %v526
        %v529 = vsel %vm318, %v524, %v525
        %v530 = vsel %vm527, %v519, %v529
        %533 = vst [vmem:[#allocation2 + $0x30] sm:$0xff] %v528
        %534 = vst [vmem:[#allocation2 + $0x38] sm:$0xff] %v530
        %v535 = vld [vmem:[%s227 + $0x8] sm:$0xff]
        %v536 = vld [vmem:[%s227 + $0x10] sm:$0xff]
        %v537 = vld [vmem:[%s227 + $0x28] sm:$0xff]
        %v538 = vld [vmem:[%s227 + $0x30] sm:$0xff]
        %s539 = scalar_lea.vmem [#allocation8], 4
        %v540 = vld [vmem:[%s539] ss:$8 sm:$0x3]
        %v542 = vlaneseq
        %v543 = vshrl.u32 %v542, 7
        %v544 = vsub.s32 0, %v543
        %v545 = vrot.slane %v540, %v544
        %v546 = vlaneseq
        %v547 = vshrl.u32 %v546, 7
        %v548 = vsub.s32 1, %v547
        %v549 = vrot.slane %v540, %v548
        %v552 = vmul.f32 %v535, %v545
        %v553 = vmul.f32 %v536, %v549
        %v554 = vmul.f32 %v537, %v545
        %v555 = vmul.f32 %v538, %v549
        %v556 = vpack.c.bf16 %v554, %v552
        %v557 = vpack.c.bf16 %v555, %v553
        %v560 = vunpack.c.l.b16 %v556
        %v561 = vunpack.c.l.b16 %v557
        %v562 = vunpack.c.h.b16 %v556
        %v563 = vunpack.c.h.b16 %v557
        %v564 = vpack.c.b16 %v561, %v560
        %v565 = vpack.c.b16 %v563, %v562
        %568 = vst [vmem:[#allocation2 + $0x40] sm:$0xff] %v564
        %569 = vst [vmem:[#allocation2 + $0x48] sm:$0xff] %v565
        %v570 = vld [vmem:[%s227 + $0x8] sm:$0xff]
        %v571 = vld [vmem:[%s227 + $0x10] sm:$0xff]
        %v572 = vld [vmem:[%s227 + $0x18] sm:$0xff]
        %v573 = vld [vmem:[%s227 + $0x28] sm:$0xff]
        %v574 = vld [vmem:[%s227 + $0x30] sm:$0xff]
        %v575 = vld [vmem:[%s227 + $0x38] sm:$0xff]
        %s576 = scalar_lea.vmem [#allocation8], 5
        %v577 = vld [vmem:[%s576] ss:$8 sm:$0x3]
        %v579 = vlaneseq
        %v580 = vshrl.u32 %v579, 7
        %v581 = vsub.s32 0, %v580
        %v582 = vrot.slane %v577, %v581
        %v583 = vlaneseq
        %v584 = vshrl.u32 %v583, 7
        %v585 = vsub.s32 1, %v584
        %v586 = vrot.slane %v577, %v585
        %587 = vrot.lane.b32.xlu0 %v582, 1
        %v588 = vpop.permute.xlu0 %587
        %589 = vrot.lane.b32.xlu0 %v586, 1
        %v590 = vpop.permute.xlu0 %589
        %vm591 = vcmask 7168
        %v592 = vsel %vm591, %v588, %v590
        %v596 = vmul.f32 %v570, %v588
        %v597 = vmul.f32 %v571, %v592
        %v598 = vmul.f32 %v572, %v590
        %v599 = vmul.f32 %v573, %v588
        %v600 = vmul.f32 %v574, %v592
        %v601 = vmul.f32 %v575, %v590
        %v602 = vpack.c.bf16 %v599, %v596
        %v603 = vpack.c.bf16 %v600, %v597
        %v604 = vpack.c.bf16 %v601, %v598
        %v608 = vunpack.c.l.b16 %v602
        %v609 = vunpack.c.l.b16 %v603
        %v610 = vunpack.c.l.b16 %v604
        %v611 = vunpack.c.h.b16 %v602
        %v612 = vunpack.c.h.b16 %v603
        %v613 = vunpack.c.h.b16 %v604
        %v614 = vpack.c.b16 %v609, %v608
        %v615 = vpack.c.b16 %v610, %v610
        %v616 = vpack.c.b16 %v612, %v611
        %v617 = vpack.c.b16 %v613, %v613
        %618 = vrot.lane.b32.xlu0 %v614, 127
        %v619 = vpop.permute.xlu0 %618
        %620 = vrot.lane.b32.xlu0 %v615, 127
        %v621 = vpop.permute.xlu0 %620
        %622 = vrot.lane.b32.xlu0 %v616, 127
        %v623 = vpop.permute.xlu0 %622
        %624 = vrot.lane.b32.xlu0 %v617, 127
        %v625 = vpop.permute.xlu0 %624
        %v626 = vrot.slane %v619, 4
        %v627 = vrot.slane %v621, 4
        %v628 = vrot.slane %v623, 4
        %v629 = vrot.slane %v625, 4
        %v630 = vsel %vm318, %v626, %v627
        %vm631 = vcmask 1039360
        %v632 = vsel %vm631, %v619, %v630
        %v633 = vsel %vm318, %v628, %v629
        %v634 = vsel %vm631, %v623, %v633
        %637 = vst [vmem:[#allocation2 + $0x50] sm:$0xff] %v632
        %638 = vst [vmem:[#allocation2 + $0x58] sm:$0xff] %v634
        %v639 = vld [vmem:[%s227 + $0x8] sm:$0xff]
        %v640 = vld [vmem:[%s227 + $0x10] sm:$0xff]
        %v641 = vld [vmem:[%s227 + $0x18] sm:$0xff]
        %v642 = vld [vmem:[%s227 + $0x28] sm:$0xff]
        %v643 = vld [vmem:[%s227 + $0x30] sm:$0xff]
        %v644 = vld [vmem:[%s227 + $0x38] sm:$0xff]
        %s645 = scalar_lea.vmem [#allocation8], 6
        %v646 = vld [vmem:[%s645] ss:$8 sm:$0x3]
        %v648 = vlaneseq
        %v649 = vshrl.u32 %v648, 7
        %v650 = vsub.s32 0, %v649
        %v651 = vrot.slane %v646, %v650
        %v652 = vlaneseq
        %v653 = vshrl.u32 %v652, 7
        %v654 = vsub.s32 1, %v653
        %v655 = vrot.slane %v646, %v654
        %656 = vrot.lane.b32.xlu0 %v651, 15
        %v657 = vpop.permute.xlu0 %656
        %658 = vrot.lane.b32.xlu0 %v655, 15
        %v659 = vpop.permute.xlu0 %658
        %vm660 = vcmask 121856
        %v661 = vsel %vm660, %v657, %v659
        %v665 = vmul.f32 %v639, %v657
        %v666 = vmul.f32 %v640, %v661
        %v667 = vmul.f32 %v641, %v659
        %v668 = vmul.f32 %v642, %v657
        %v669 = vmul.f32 %v643, %v661
        %v670 = vmul.f32 %v644, %v659
        %v671 = vpack.c.bf16 %v668, %v665
        %v672 = vpack.c.bf16 %v669, %v666
        %v673 = vpack.c.bf16 %v670, %v667
        %v677 = vunpack.c.l.b16 %v671
        %v678 = vunpack.c.l.b16 %v672
        %v679 = vunpack.c.l.b16 %v673
        %v680 = vunpack.c.h.b16 %v671
        %v681 = vunpack.c.h.b16 %v672
        %v682 = vunpack.c.h.b16 %v673
        %v683 = vpack.c.b16 %v678, %v677
        %v684 = vpack.c.b16 %v679, %v679
        %v685 = vpack.c.b16 %v681, %v680
        %v686 = vpack.c.b16 %v682, %v682
        %687 = vrot.lane.b32.xlu0 %v683, 113
        %v688 = vpop.permute.xlu0 %687
        %689 = vrot.lane.b32.xlu0 %v684, 113
        %v690 = vpop.permute.xlu0 %689
        %691 = vrot.lane.b32.xlu0 %v685, 113
        %v692 = vpop.permute.xlu0 %691
        %693 = vrot.lane.b32.xlu0 %v686, 113
        %v694 = vpop.permute.xlu0 %693
        %v695 = vrot.slane %v688, 4
        %v696 = vrot.slane %v690, 4
        %v697 = vrot.slane %v692, 4
        %v698 = vrot.slane %v694, 4
        %v699 = vsel %vm318, %v695, %v696
        %vm700 = vcmask 924672
        %v701 = vsel %vm700, %v688, %v699
        %v702 = vsel %vm318, %v697, %v698
        %v703 = vsel %vm700, %v692, %v702
        %706 = vst [vmem:[#allocation2 + $0x60] sm:$0xff] %v701
        %707 = vst [vmem:[#allocation2 + $0x68] sm:$0xff] %v703
        %v708 = vld [vmem:[%s227 + $0x8] sm:$0xff]
        %v709 = vld [vmem:[%s227 + $0x10] sm:$0xff]
        %v710 = vld [vmem:[%s227 + $0x18] sm:$0xff]
        %v711 = vld [vmem:[%s227 + $0x28] sm:$0xff]
        %v712 = vld [vmem:[%s227 + $0x30] sm:$0xff]
        %v713 = vld [vmem:[%s227 + $0x38] sm:$0xff]
        %s714 = scalar_lea.vmem [#allocation8], 7
        %v715 = vld [vmem:[%s714] ss:$8 sm:$0x3]
        %v717 = vlaneseq
        %v718 = vshrl.u32 %v717, 7
        %v719 = vsub.s32 0, %v718
        %v720 = vrot.slane %v715, %v719
        %v721 = vlaneseq
        %v722 = vshrl.u32 %v721, 7
        %v723 = vsub.s32 1, %v722
        %v724 = vrot.slane %v715, %v723
        %725 = vrot.lane.b32.xlu0 %v720, 16
        %v726 = vpop.permute.xlu0 %725
        %727 = vrot.lane.b32.xlu0 %v724, 16
        %v728 = vpop.permute.xlu0 %727
        %vm729 = vcmask 130048
        %v730 = vsel %vm729, %v726, %v728
        %v734 = vmul.f32 %v708, %v726
        %v735 = vmul.f32 %v709, %v730
        %v736 = vmul.f32 %v710, %v728
        %v737 = vmul.f32 %v711, %v726
        %v738 = vmul.f32 %v712, %v730
        %v739 = vmul.f32 %v713, %v728
        %v740 = vpack.c.bf16 %v737, %v734
        %v741 = vpack.c.bf16 %v738, %v735
        %v742 = vpack.c.bf16 %v739, %v736
        %v746 = vunpack.c.l.b16 %v740
        %v747 = vunpack.c.l.b16 %v741
        %v748 = vunpack.c.l.b16 %v742
        %v749 = vunpack.c.h.b16 %v740
        %v750 = vunpack.c.h.b16 %v741
        %v751 = vunpack.c.h.b16 %v742
        %v752 = vpack.c.b16 %v747, %v746
        %v753 = vpack.c.b16 %v748, %v748
        %v754 = vpack.c.b16 %v750, %v749
        %v755 = vpack.c.b16 %v751, %v751
        %756 = vrot.lane.b32.xlu0 %v752, 112
        %v757 = vpop.permute.xlu0 %756
        %758 = vrot.lane.b32.xlu0 %v753, 112
        %v759 = vpop.permute.xlu0 %758
        %760 = vrot.lane.b32.xlu0 %v754, 112
        %v761 = vpop.permute.xlu0 %760
        %762 = vrot.lane.b32.xlu0 %v755, 112
        %v763 = vpop.permute.xlu0 %762
        %v764 = vrot.slane %v757, 4
        %v765 = vrot.slane %v759, 4
        %v766 = vrot.slane %v761, 4
        %v767 = vrot.slane %v763, 4
        %v768 = vsel %vm318, %v764, %v765
        %vm769 = vcmask 916480
        %v770 = vsel %vm769, %v757, %v768
        %v771 = vsel %vm318, %v766, %v767
        %v772 = vsel %vm769, %v761, %v771
        %775 = vst [vmem:[#allocation2 + $0x70] sm:$0xff] %v770
        %776 = vst [vmem:[#allocation2 + $0x78] sm:$0xff] %v772
        %v777 = vld [vmem:[%s227 + $0x8] sm:$0xff]
        %v778 = vld [vmem:[%s227 + $0x10] sm:$0xff]
        %v779 = vld [vmem:[%s227 + $0x18] sm:$0xff]
        %v780 = vld [vmem:[%s227 + $0x28] sm:$0xff]
        %v781 = vld [vmem:[%s227 + $0x30] sm:$0xff]
        %v782 = vld [vmem:[%s227 + $0x38] sm:$0xff]
        %s783 = scalar_lea.vmem [#allocation8], 16
        %v784 = vld [vmem:[%s783] ss:$8 sm:$0x3]
        %v786 = vlaneseq
        %v787 = vshrl.u32 %v786, 7
        %v788 = vsub.s32 0, %v787
        %v789 = vrot.slane %v784, %v788
        %v790 = vlaneseq
        %v791 = vshrl.u32 %v790, 7
        %v792 = vsub.s32 1, %v791
        %v793 = vrot.slane %v784, %v792
        %794 = vrot.lane.b32.xlu0 %v789, 17
        %v795 = vpop.permute.xlu0 %794
        %796 = vrot.lane.b32.xlu0 %v793, 17
        %v797 = vpop.permute.xlu0 %796
        %vm798 = vcmask 138240
        %v799 = vsel %vm798, %v795, %v797
        %v803 = vmul.f32 %v777, %v795
        %v804 = vmul.f32 %v778, %v799
        %v805 = vmul.f32 %v779, %v797
        %v806 = vmul.f32 %v780, %v795
        %v807 = vmul.f32 %v781, %v799
        %v808 = vmul.f32 %v782, %v797
        %v809 = vpack.c.bf16 %v806, %v803
        %v810 = vpack.c.bf16 %v807, %v804
        %v811 = vpack.c.bf16 %v808, %v805
        %v815 = vunpack.c.l.b16 %v809
        %v816 = vunpack.c.l.b16 %v810
        %v817 = vunpack.c.l.b16 %v811
        %v818 = vunpack.c.h.b16 %v809
        %v819 = vunpack.c.h.b16 %v810
        %v820 = vunpack.c.h.b16 %v811
        %v821 = vpack.c.b16 %v816, %v815
        %v822 = vpack.c.b16 %v817, %v817
        %v823 = vpack.c.b16 %v819, %v818
        %v824 = vpack.c.b16 %v820, %v820
        %825 = vrot.lane.b32.xlu0 %v821, 111
        %v826 = vpop.permute.xlu0 %825
        %827 = vrot.lane.b32.xlu0 %v822, 111
        %v828 = vpop.permute.xlu0 %827
        %829 = vrot.lane.b32.xlu0 %v823, 111
        %v830 = vpop.permute.xlu0 %829
        %831 = vrot.lane.b32.xlu0 %v824, 111
        %v832 = vpop.permute.xlu0 %831
        %v833 = vrot.slane %v826, 4
        %v834 = vrot.slane %v828, 4
        %v835 = vrot.slane %v830, 4
        %v836 = vrot.slane %v832, 4
        %v837 = vsel %vm318, %v833, %v834
        %vm838 = vcmask 908288
        %v839 = vsel %vm838, %v826, %v837
        %v840 = vsel %vm318, %v835, %v836
        %v841 = vsel %vm838, %v830, %v840
        %844 = vst [vmem:[#allocation2 + $0x80] sm:$0xff] %v839
        %845 = vst [vmem:[#allocation2 + $0x88] sm:$0xff] %v841
        %v846 = vld [vmem:[%s227 + $0x8] sm:$0xff]
        %v847 = vld [vmem:[%s227 + $0x10] sm:$0xff]
        %v848 = vld [vmem:[%s2] sm:$0xff]
        %v849 = vld [vmem:[%s2 + $0x8] sm:$0xff]
        %v850 = vld [vmem:[%s2 + $0x10] sm:$0xff]
        %v851 = vld [vmem:[#allocation2] sm:$0xff]
        %v852 = vld [vmem:[#allocation2 + $0x8] sm:$0xff]
        %v853 = vld [vmem:[#allocation2 + $0x10] sm:$0xff]
        %v854 = vld [vmem:[#allocation2 + $0x18] sm:$0xff]
        %v855 = vld [vmem:[#allocation2 + $0x20] sm:$0xff]
        %v856 = vld [vmem:[#allocation2 + $0x28] sm:$0xff]
        %v857 = vld [vmem:[#allocation2 + $0x30] sm:$0xff]
        %v858 = vld [vmem:[#allocation2 + $0x38] sm:$0xff]
        %v859 = vld [vmem:[#allocation2 + $0x40] sm:$0xff]
        %v860 = vld [vmem:[#allocation2 + $0x48] sm:$0xff]
        %v861 = vld [vmem:[#allocation2 + $0x50] sm:$0xff]
        %v862 = vld [vmem:[#allocation2 + $0x58] sm:$0xff]
        %v863 = vld [vmem:[#allocation2 + $0x60] sm:$0xff]
        %v864 = vld [vmem:[#allocation2 + $0x68] sm:$0xff]
        %v865 = vld [vmem:[#allocation2 + $0x70] sm:$0xff]
        %v866 = vld [vmem:[#allocation2 + $0x78] sm:$0xff]
        %v867 = vld [vmem:[#allocation2 + $0x80] sm:$0xff]
        %v868 = vld [vmem:[#allocation2 + $0x88] sm:$0xff]
        %v869 = vld [vmem:[%s4] sm:$0xff]
        %v870 = vld [vmem:[%s4 + $0x8] sm:$0xff]
        %v871 = vld [vmem:[%s4 + $0x10] sm:$0xff]
        %873 = vset.pattern.permute.xlu0 0
        %874 = vperm.xlu0 %873, %v869
        %v875 = vpop.permute.xlu0 %874
        %878 = vset.pattern.permute.xlu0 0
        %879 = vperm.xlu0 %878, %v870
        %v880 = vpop.permute.xlu0 %879
        %883 = vset.pattern.permute.xlu0 0
        %884 = vperm.xlu0 %883, %v871
        %v885 = vpop.permute.xlu0 %884
        %v890 = vunpack.c.l.b16 %v848
        %v891 = vunpack.c.h.b16 %v848
        %v892 = vunpack.c.l.b16 %v849
        %v893 = vunpack.c.h.b16 %v849
        %v894 = vunpack.c.l.b16 %v850
        %v895 = vunpack.c.h.b16 %v850
        %v896 = vpack.c.b16 %v892, %v890
        %v897 = vpack.c.b16 %v893, %v891
        %v898 = vpack.c.b16 %v894, %v894
        %v899 = vpack.c.b16 %v895, %v895
        %v920 = vunpack.c.l.b16 %v851
        %v921 = vunpack.c.h.b16 %v851
        %v922 = vunpack.c.l.b16 %v852
        %v923 = vunpack.c.h.b16 %v852
        %v924 = vunpack.c.l.b16 %v853
        %v925 = vunpack.c.h.b16 %v853
        %v926 = vunpack.c.l.b16 %v854
        %v927 = vunpack.c.h.b16 %v854
        %v928 = vunpack.c.l.b16 %v855
        %v929 = vunpack.c.h.b16 %v855
        %v930 = vunpack.c.l.b16 %v856
        %v931 = vunpack.c.h.b16 %v856
        %v932 = vunpack.c.l.b16 %v857
        %v933 = vunpack.c.h.b16 %v857
        %v934 = vunpack.c.l.b16 %v858
        %v935 = vunpack.c.h.b16 %v858
        %v936 = vunpack.c.l.b16 %v859
        %v937 = vunpack.c.h.b16 %v859
        %v938 = vunpack.c.l.b16 %v860
        %v939 = vunpack.c.h.b16 %v860
        %v940 = vunpack.c.l.b16 %v861
        %v941 = vunpack.c.h.b16 %v861
        %v942 = vunpack.c.l.b16 %v862
        %v943 = vunpack.c.h.b16 %v862
        %v944 = vunpack.c.l.b16 %v863
        %v945 = vunpack.c.h.b16 %v863
        %v946 = vunpack.c.l.b16 %v864
        %v947 = vunpack.c.h.b16 %v864
        %v948 = vunpack.c.l.b16 %v865
        %v949 = vunpack.c.h.b16 %v865
        %v950 = vunpack.c.l.b16 %v866
        %v951 = vunpack.c.h.b16 %v866
        %v952 = vunpack.c.l.b16 %v867
        %v953 = vunpack.c.h.b16 %v867
        %v954 = vunpack.c.l.b16 %v868
        %v955 = vunpack.c.h.b16 %v868
        %v956 = vpack.c.b16 %v922, %v920
        %v957 = vpack.c.b16 %v923, %v921
        %v958 = vpack.c.b16 %v926, %v924
        %v959 = vpack.c.b16 %v927, %v925
        %v960 = vpack.c.b16 %v930, %v928
        %v961 = vpack.c.b16 %v931, %v929
        %v962 = vpack.c.b16 %v934, %v932
        %v963 = vpack.c.b16 %v935, %v933
        %v964 = vpack.c.b16 %v938, %v936
        %v965 = vpack.c.b16 %v939, %v937
        %v966 = vpack.c.b16 %v942, %v940
        %v967 = vpack.c.b16 %v943, %v941
        %v968 = vpack.c.b16 %v946, %v944
        %v969 = vpack.c.b16 %v947, %v945
        %v970 = vpack.c.b16 %v950, %v948
        %v971 = vpack.c.b16 %v951, %v949
        %v972 = vpack.c.b16 %v954, %v952
        %v973 = vpack.c.b16 %v955, %v953
        %v993 = vsel %vm729, %v897, 0
        %v996 = vsel %vm729, %v899, 0
        %998 = vmatprep.subr.bf16.mxu0 %v971
        %999 = vmatpush1.bf16.msra.mxu0 %v970
        %1000 = vmatprep.subr.bf16.mxu0 %v969
        %1001 = vmatpush1.bf16.msra.mxu0 %v968
        %1002 = vmatprep.subr.bf16.mxu0 %v967
        %1003 = vmatpush1.bf16.msra.mxu0 %v966
        %1004 = vmatprep.subr.bf16.mxu0 %v965
        %1005 = vmatpush1.bf16.msra.mxu0 %v964
        %1006 = vmatprep.subr.bf16.mxu0 %v963
        %1007 = vmatpush1.bf16.msra.mxu0 %v962
        %1008 = vmatprep.subr.bf16.mxu0 %v961
        %1009 = vmatpush1.bf16.msra.mxu0 %v960
        %1010 = vmatprep.subr.bf16.mxu0 %v959
        %1011 = vmatpush1.bf16.msra.mxu0 %v958
        %1012 = vmatprep.subr.bf16.mxu0 %v957
        %1013 = vmatpush1.bf16.msra.mxu0 %v956
        %1014 = vmatprep.subr.bf16.mxu0 0
        %1015 = vmatpush2.bf16.msra.mxu0 0
        %1016 = vmatprep.subr.bf16.mxu0 0
        %1017 = vmatpush2.bf16.msra.mxu0 0
        %1018 = vmatprep.subr.bf16.mxu0 0
        %1019 = vmatpush2.bf16.msra.mxu0 0
        %1020 = vmatprep.subr.bf16.mxu0 0
        %1021 = vmatpush2.bf16.msra.mxu0 0
        %1022 = vmatprep.subr.bf16.mxu0 0
        %1023 = vmatpush2.bf16.msra.mxu0 0
        %1024 = vmatprep.subr.bf16.mxu0 0
        %1025 = vmatpush2.bf16.msra.mxu0 0
        %1026 = vmatprep.subr.bf16.mxu0 0
        %1027 = vmatpush2.bf16.msra.mxu0 0
        %1028 = vmatprep.subr.bf16.mxu0 %v973
        %1029 = vmatpush2.bf16.msra.mxu0 %v972
        %1030 = vmatprep.mubr.bf16.mxu0 %v993
        %1031 = vmatmul.mubr.bf16.gmra.mxu0 %v896
        %v1032 = vpop.f32.mrf.mxu0
        %v1033 = vadd.f32 %v875, %v1032
        %v1034 = vpop.f32.mrf.mxu0
        %v1035 = vadd.f32 %v875, %v1034
        %v1036 = vpop.f32.mrf.mxu0
        %v1037 = vadd.f32 %v880, %v1036
        %v1038 = vpop.f32.mrf.mxu0
        %v1039 = vadd.f32 %v880, %v1038
        %1040 = vmatprep.mubr.bf16.mxu0 %v996
        %1041 = vmatmul.mubr.bf16.gmra.mxu0 %v898
        %v1042 = vpop.f32.mrf.mxu0
        %v1043 = vadd.f32 %v885, %v1042
        %v1044 = vpop.f32.mrf.mxu0
        %v1045 = vadd.f32 %v885, %v1044
        %v1046 = vpop.f32.mrf.mxu0
        %v1047 = vpop.f32.mrf.mxu0
        %1048 = vdwg.mxu0
        %v1049 = vsub.f32 0.0, %v1033
        %v1050 = vsub.f32 0.0, %v1035
        %v1051 = vmul.f32 %v1049, 1.442695
        %v1052 = vpow.pop %v1051
        %v1053 = vmul.f32 %v1050, 1.442695
        %v1054 = vpow.pop %v1053
        %v1055 = vadd.f32 %v1052, 1.0
        %v1056 = vadd.f32 %v1054, 1.0
        %v1057 = vrcp.pop %v1055
        %v1058 = vmul.f32 1.0, %v1057
        %v1059 = vrcp.pop %v1056
        %v1060 = vmul.f32 1.0, %v1059
        %v1061 = vsub.f32 0.0, %v1037
        %v1062 = vsub.f32 0.0, %v1039
        %v1063 = vmul.f32 %v1061, 1.442695
        %v1064 = vpow.pop %v1063
        %v1065 = vmul.f32 %v1062, 1.442695
        %v1066 = vpow.pop %v1065
        %v1067 = vadd.f32 %v1064, 1.0
        %v1068 = vadd.f32 %v1066, 1.0
        %v1069 = vrcp.pop %v1067
        %v1070 = vmul.f32 1.0, %v1069
        %v1071 = vrcp.pop %v1068
        %v1072 = vmul.f32 1.0, %v1071
        %v1073 = vmul.f32 %v1058, %v846
        %v1074 = vmul.f32 %v1060, %v847
        %1075 = vst [vmem:[#allocation4] sm:$0xff] 0.0
        %1076 = vst [vmem:[#allocation4 + $0x18] sm:$0xff] 0.0
        %1077 = vst [vmem:[#allocation4 + $0x8] sm:$0xff] %v1073
        %1078 = vst [vmem:[#allocation4 + $0x10] sm:$0xff] %v1074
        %v1079 = vld [vmem:[#allocation4] sm:$0xff]
        %v1080 = vld [vmem:[#allocation4 + $0x8] sm:$0xff]
        %v1081 = vld [vmem:[#allocation4 + $0x10] sm:$0xff]
        %v1082 = vld [vmem:[#allocation8] ss:$8 sm:$0x3]
        %v1084 = vlaneseq
        %v1085 = vshrl.u32 %v1084, 7
        %v1086 = vsub.s32 0, %v1085
        %v1087 = vrot.slane %v1082, %v1086
        %v1088 = vlaneseq
        %v1089 = vshrl.u32 %v1088, 7
        %v1090 = vsub.s32 1, %v1089
        %v1091 = vrot.slane %v1082, %v1090
        %1092 = vrot.lane.b32.xlu0 %v1087, 111
        %v1093 = vpop.permute.xlu0 %1092
        %1094 = vrot.lane.b32.xlu0 %v1091, 111
        %v1095 = vpop.permute.xlu0 %1094
        %v1096 = vsel %vm279, %v1093, %v1095
        %v1100 = vmul.f32 %v1079, %v1093
        %v1101 = vmul.f32 %v1080, %v1096
        %v1102 = vmul.f32 %v1081, %v1095
        %1106 = vrot.lane.b32.xlu0 %v1100, 17
        %v1107 = vpop.permute.xlu0 %1106
        %1108 = vrot.lane.b32.xlu0 %v1101, 17
        %v1109 = vpop.permute.xlu0 %1108
        %1110 = vrot.lane.b32.xlu0 %v1102, 17
        %v1111 = vpop.permute.xlu0 %1110
        %v1112 = vsel %vm798, %v1107, %v1109
        %v1113 = vsel %vm798, %v1109, %v1111
        %1116 = vst [vmem:[#allocation3] sm:$0xff] %v1112
        %1117 = vst [vmem:[#allocation3 + $0x8] sm:$0xff] %v1113
        %v1118 = vld [vmem:[#allocation4] sm:$0xff]
        %v1119 = vld [vmem:[#allocation4 + $0x8] sm:$0xff]
        %v1120 = vld [vmem:[#allocation4 + $0x10] sm:$0xff]
        %v1121 = vld [vmem:[%s334] ss:$8 sm:$0x3]
        %v1123 = vlaneseq
        %v1124 = vshrl.u32 %v1123, 7
        %v1125 = vsub.s32 0, %v1124
        %v1126 = vrot.slane %v1121, %v1125
        %v1127 = vlaneseq
        %v1128 = vshrl.u32 %v1127, 7
        %v1129 = vsub.s32 1, %v1128
        %v1130 = vrot.slane %v1121, %v1129
        %1131 = vrot.lane.b32.xlu0 %v1126, 112
        %v1132 = vpop.permute.xlu0 %1131
        %1133 = vrot.lane.b32.xlu0 %v1130, 112
        %v1134 = vpop.permute.xlu0 %1133
        %v1135 = vsel %vm349, %v1132, %v1134
        %v1139 = vmul.f32 %v1118, %v1132
        %v1140 = vmul.f32 %v1119, %v1135
        %v1141 = vmul.f32 %v1120, %v1134
        %1145 = vrot.lane.b32.xlu0 %v1139, 16
        %v1146 = vpop.permute.xlu0 %1145
        %1147 = vrot.lane.b32.xlu0 %v1140, 16
        %v1148 = vpop.permute.xlu0 %1147
        %1149 = vrot.lane.b32.xlu0 %v1141, 16
        %v1150 = vpop.permute.xlu0 %1149
        %v1151 = vsel %vm729, %v1146, %v1148
        %v1152 = vsel %vm729, %v1148, %v1150
        %1155 = vst [vmem:[#allocation3 + $0x10] sm:$0xff] %v1151
        %1156 = vst [vmem:[#allocation3 + $0x18] sm:$0xff] %v1152
        %v1157 = vld [vmem:[#allocation4] sm:$0xff]
        %v1158 = vld [vmem:[#allocation4 + $0x8] sm:$0xff]
        %v1159 = vld [vmem:[#allocation4 + $0x10] sm:$0xff]
        %v1160 = vld [vmem:[%s403] ss:$8 sm:$0x3]
        %v1162 = vlaneseq
        %v1163 = vshrl.u32 %v1162, 7
        %v1164 = vsub.s32 0, %v1163
        %v1165 = vrot.slane %v1160, %v1164
        %v1166 = vlaneseq
        %v1167 = vshrl.u32 %v1166, 7
        %v1168 = vsub.s32 1, %v1167
        %v1169 = vrot.slane %v1160, %v1168
        %1170 = vrot.lane.b32.xlu0 %v1165, 113
        %v1171 = vpop.permute.xlu0 %1170
        %1172 = vrot.lane.b32.xlu0 %v1169, 113
        %v1173 = vpop.permute.xlu0 %1172
        %v1174 = vsel %vm418, %v1171, %v1173
        %v1178 = vmul.f32 %v1157, %v1171
        %v1179 = vmul.f32 %v1158, %v1174
        %v1180 = vmul.f32 %v1159, %v1173
        %1184 = vrot.lane.b32.xlu0 %v1178, 15
        %v1185 = vpop.permute.xlu0 %1184
        %1186 = vrot.lane.b32.xlu0 %v1179, 15
        %v1187 = vpop.permute.xlu0 %1186
        %1188 = vrot.lane.b32.xlu0 %v1180, 15
        %v1189 = vpop.permute.xlu0 %1188
        %v1190 = vsel %vm660, %v1185, %v1187
        %v1191 = vsel %vm660, %v1187, %v1189
        %1194 = vst [vmem:[#allocation3 + $0x20] sm:$0xff] %v1190
        %1195 = vst [vmem:[#allocation3 + $0x28] sm:$0xff] %v1191
        %v1196 = vld [vmem:[#allocation4] sm:$0xff]
        %v1197 = vld [vmem:[#allocation4 + $0x8] sm:$0xff]
        %v1198 = vld [vmem:[#allocation4 + $0x10] sm:$0xff]
        %v1199 = vld [vmem:[%s472] ss:$8 sm:$0x3]
        %v1201 = vlaneseq
        %v1202 = vshrl.u32 %v1201, 7
        %v1203 = vsub.s32 0, %v1202
        %v1204 = vrot.slane %v1199, %v1203
        %v1205 = vlaneseq
        %v1206 = vshrl.u32 %v1205, 7
        %v1207 = vsub.s32 1, %v1206
        %v1208 = vrot.slane %v1199, %v1207
        %1209 = vrot.lane.b32.xlu0 %v1204, 127
        %v1210 = vpop.permute.xlu0 %1209
        %1211 = vrot.lane.b32.xlu0 %v1208, 127
        %v1212 = vpop.permute.xlu0 %1211
        %v1213 = vsel %vm487, %v1210, %v1212
        %v1217 = vmul.f32 %v1196, %v1210
        %v1218 = vmul.f32 %v1197, %v1213
        %v1219 = vmul.f32 %v1198, %v1212
        %1223 = vrot.lane.b32.xlu0 %v1217, 1
        %v1224 = vpop.permute.xlu0 %1223
        %1225 = vrot.lane.b32.xlu0 %v1218, 1
        %v1226 = vpop.permute.xlu0 %1225
        %1227 = vrot.lane.b32.xlu0 %v1219, 1
        %v1228 = vpop.permute.xlu0 %1227
        %v1229 = vsel %vm591, %v1224, %v1226
        %v1230 = vsel %vm591, %v1226, %v1228
        %1233 = vst [vmem:[#allocation3 + $0x30] sm:$0xff] %v1229
        %1234 = vst [vmem:[#allocation3 + $0x38] sm:$0xff] %v1230
        %v1235 = vld [vmem:[#allocation4 + $0x8] sm:$0xff]
        %v1236 = vld [vmem:[#allocation4 + $0x10] sm:$0xff]
        %v1237 = vld [vmem:[%s539] ss:$8 sm:$0x3]
        %v1239 = vlaneseq
        %v1240 = vshrl.u32 %v1239, 7
        %v1241 = vsub.s32 0, %v1240
        %v1242 = vrot.slane %v1237, %v1241
        %v1243 = vlaneseq
        %v1244 = vshrl.u32 %v1243, 7
        %v1245 = vsub.s32 1, %v1244
        %v1246 = vrot.slane %v1237, %v1245
        %v1249 = vmul.f32 %v1235, %v1242
        %v1250 = vmul.f32 %v1236, %v1246
        %1251 = vst [vmem:[#allocation3 + $0x40] sm:$0xff] %v1249
        %1252 = vst [vmem:[#allocation3 + $0x48] sm:$0xff] %v1250
        %v1253 = vld [vmem:[#allocation4 + $0x8] sm:$0xff]
        %v1254 = vld [vmem:[#allocation4 + $0x10] sm:$0xff]
        %v1255 = vld [vmem:[#allocation4 + $0x18] sm:$0xff]
        %v1256 = vld [vmem:[%s576] ss:$8 sm:$0x3]
        %v1258 = vlaneseq
        %v1259 = vshrl.u32 %v1258, 7
        %v1260 = vsub.s32 0, %v1259
        %v1261 = vrot.slane %v1256, %v1260
        %v1262 = vlaneseq
        %v1263 = vshrl.u32 %v1262, 7
        %v1264 = vsub.s32 1, %v1263
        %v1265 = vrot.slane %v1256, %v1264
        %1266 = vrot.lane.b32.xlu0 %v1261, 1
        %v1267 = vpop.permute.xlu0 %1266
        %1268 = vrot.lane.b32.xlu0 %v1265, 1
        %v1269 = vpop.permute.xlu0 %1268
        %v1270 = vsel %vm591, %v1267, %v1269
        %v1274 = vmul.f32 %v1253, %v1267
        %v1275 = vmul.f32 %v1254, %v1270
        %v1276 = vmul.f32 %v1255, %v1269
        %1280 = vrot.lane.b32.xlu0 %v1274, 127
        %v1281 = vpop.permute.xlu0 %1280
        %1282 = vrot.lane.b32.xlu0 %v1275, 127
        %v1283 = vpop.permute.xlu0 %1282
        %1284 = vrot.lane.b32.xlu0 %v1276, 127
        %v1285 = vpop.permute.xlu0 %1284
        %v1286 = vsel %vm487, %v1281, %v1283
        %v1287 = vsel %vm487, %v1283, %v1285
        %1290 = vst [vmem:[#allocation3 + $0x50] sm:$0xff] %v1286
        %1291 = vst [vmem:[#allocation3 + $0x58] sm:$0xff] %v1287
        %v1292 = vld [vmem:[#allocation4 + $0x8] sm:$0xff]
        %v1293 = vld [vmem:[#allocation4 + $0x10] sm:$0xff]
        %v1294 = vld [vmem:[#allocation4 + $0x18] sm:$0xff]
        %v1295 = vld [vmem:[%s645] ss:$8 sm:$0x3]
        %v1297 = vlaneseq
        %v1298 = vshrl.u32 %v1297, 7
        %v1299 = vsub.s32 0, %v1298
        %v1300 = vrot.slane %v1295, %v1299
        %v1301 = vlaneseq
        %v1302 = vshrl.u32 %v1301, 7
        %v1303 = vsub.s32 1, %v1302
        %v1304 = vrot.slane %v1295, %v1303
        %1305 = vrot.lane.b32.xlu0 %v1300, 15
        %v1306 = vpop.permute.xlu0 %1305
        %1307 = vrot.lane.b32.xlu0 %v1304, 15
        %v1308 = vpop.permute.xlu0 %1307
        %v1309 = vsel %vm660, %v1306, %v1308
        %v1313 = vmul.f32 %v1292, %v1306
        %v1314 = vmul.f32 %v1293, %v1309
        %v1315 = vmul.f32 %v1294, %v1308
        %1319 = vrot.lane.b32.xlu0 %v1313, 113
        %v1320 = vpop.permute.xlu0 %1319
        %1321 = vrot.lane.b32.xlu0 %v1314, 113
        %v1322 = vpop.permute.xlu0 %1321
        %1323 = vrot.lane.b32.xlu0 %v1315, 113
        %v1324 = vpop.permute.xlu0 %1323
        %v1325 = vsel %vm418, %v1320, %v1322
        %v1326 = vsel %vm418, %v1322, %v1324
        %1329 = vst [vmem:[#allocation3 + $0x60] sm:$0xff] %v1325
        %1330 = vst [vmem:[#allocation3 + $0x68] sm:$0xff] %v1326
        %v1331 = vld [vmem:[#allocation4 + $0x8] sm:$0xff]
        %v1332 = vld [vmem:[#allocation4 + $0x10] sm:$0xff]
        %v1333 = vld [vmem:[#allocation4 + $0x18] sm:$0xff]
        %v1334 = vld [vmem:[%s714] ss:$8 sm:$0x3]
        %v1336 = vlaneseq
        %v1337 = vshrl.u32 %v1336, 7
        %v1338 = vsub.s32 0, %v1337
        %v1339 = vrot.slane %v1334, %v1338
        %v1340 = vlaneseq
        %v1341 = vshrl.u32 %v1340, 7
        %v1342 = vsub.s32 1, %v1341
        %v1343 = vrot.slane %v1334, %v1342
        %1344 = vrot.lane.b32.xlu0 %v1339, 16
        %v1345 = vpop.permute.xlu0 %1344
        %1346 = vrot.lane.b32.xlu0 %v1343, 16
        %v1347 = vpop.permute.xlu0 %1346
        %v1348 = vsel %vm729, %v1345, %v1347
        %v1352 = vmul.f32 %v1331, %v1345
        %v1353 = vmul.f32 %v1332, %v1348
        %v1354 = vmul.f32 %v1333, %v1347
        %1358 = vrot.lane.b32.xlu0 %v1352, 112
        %v1359 = vpop.permute.xlu0 %1358
        %1360 = vrot.lane.b32.xlu0 %v1353, 112
        %v1361 = vpop.permute.xlu0 %1360
        %1362 = vrot.lane.b32.xlu0 %v1354, 112
        %v1363 = vpop.permute.xlu0 %1362
        %v1364 = vsel %vm349, %v1359, %v1361
        %v1365 = vsel %vm349, %v1361, %v1363
        %1368 = vst [vmem:[#allocation3 + $0x70] sm:$0xff] %v1364
        %1369 = vst [vmem:[#allocation3 + $0x78] sm:$0xff] %v1365
        %v1370 = vld [vmem:[#allocation4 + $0x8] sm:$0xff]
        %v1371 = vld [vmem:[#allocation4 + $0x10] sm:$0xff]
        %v1372 = vld [vmem:[#allocation4 + $0x18] sm:$0xff]
        %v1373 = vld [vmem:[%s783] ss:$8 sm:$0x3]
        %v1375 = vlaneseq
        %v1376 = vshrl.u32 %v1375, 7
        %v1377 = vsub.s32 0, %v1376
        %v1378 = vrot.slane %v1373, %v1377
        %v1379 = vlaneseq
        %v1380 = vshrl.u32 %v1379, 7
        %v1381 = vsub.s32 1, %v1380
        %v1382 = vrot.slane %v1373, %v1381
        %1383 = vrot.lane.b32.xlu0 %v1378, 17
        %v1384 = vpop.permute.xlu0 %1383
        %1385 = vrot.lane.b32.xlu0 %v1382, 17
        %v1386 = vpop.permute.xlu0 %1385
        %v1387 = vsel %vm798, %v1384, %v1386
        %v1391 = vmul.f32 %v1370, %v1384
        %v1392 = vmul.f32 %v1371, %v1387
        %v1393 = vmul.f32 %v1372, %v1386
        %1397 = vrot.lane.b32.xlu0 %v1391, 111
        %v1398 = vpop.permute.xlu0 %1397
        %1399 = vrot.lane.b32.xlu0 %v1392, 111
        %v1400 = vpop.permute.xlu0 %1399
        %1401 = vrot.lane.b32.xlu0 %v1393, 111
        %v1402 = vpop.permute.xlu0 %1401
        %v1403 = vsel %vm279, %v1398, %v1400
        %v1404 = vsel %vm279, %v1400, %v1402
        %1407 = vst [vmem:[#allocation3 + $0x80] sm:$0xff] %v1403
        %1408 = vst [vmem:[#allocation3 + $0x88] sm:$0xff] %v1404
        %v1409 = vld [vmem:[%s3] sm:$0xf]
        %v1410 = vld [vmem:[#allocation3] sm:$0xff]
        %v1411 = vld [vmem:[#allocation3 + $0x8] sm:$0xff]
        %v1412 = vld [vmem:[#allocation3 + $0x10] sm:$0xff]
        %v1413 = vld [vmem:[#allocation3 + $0x18] sm:$0xff]
        %v1414 = vld [vmem:[#allocation3 + $0x20] sm:$0xff]
        %v1415 = vld [vmem:[#allocation3 + $0x28] sm:$0xff]
        %v1416 = vld [vmem:[#allocation3 + $0x30] sm:$0xff]
        %v1417 = vld [vmem:[#allocation3 + $0x38] sm:$0xff]
        %v1418 = vld [vmem:[#allocation3 + $0x40] sm:$0xff]
        %v1419 = vld [vmem:[#allocation3 + $0x48] sm:$0xff]
        %v1420 = vld [vmem:[#allocation3 + $0x50] sm:$0xff]
        %v1421 = vld [vmem:[#allocation3 + $0x58] sm:$0xff]
        %v1422 = vld [vmem:[#allocation3 + $0x60] sm:$0xff]
        %v1423 = vld [vmem:[#allocation3 + $0x68] sm:$0xff]
        %v1424 = vld [vmem:[#allocation3 + $0x70] sm:$0xff]
        %v1425 = vld [vmem:[#allocation3 + $0x78] sm:$0xff]
        %v1426 = vld [vmem:[#allocation3 + $0x80] sm:$0xff]
        %v1427 = vld [vmem:[#allocation3 + $0x88] sm:$0xff]
        %v1428 = vpack.c.bf16 %v1412, %v1410
        %v1429 = vpack.c.bf16 %v1413, %v1411
        %v1430 = vpack.c.bf16 %v1416, %v1414
        %v1431 = vpack.c.bf16 %v1417, %v1415
        %v1432 = vpack.c.bf16 %v1420, %v1418
        %v1433 = vpack.c.bf16 %v1421, %v1419
        %v1434 = vpack.c.bf16 %v1424, %v1422
        %v1435 = vpack.c.bf16 %v1425, %v1423
        %v1436 = vpack.c.bf16 %v1426, %v1426
        %v1437 = vpack.c.bf16 %v1427, %v1427
        %vm1438 = vcmask 588800
        %v1440 = vsel %vm1438, %v1409, 0
        %vm1442 = vcmask 1043456
        %v1444 = vsel %vm1442, %v1436, 0
        %v1447 = vsel %vm1442, %v1437, 0
        %1449 = vmatprep.subr.bf16.mxu0 0
        %1450 = vmatpush1.bf16.msra.mxu0 0
        %1451 = vmatprep.subr.bf16.mxu0 0
        %1452 = vmatpush1.bf16.msra.mxu0 0
        %1453 = vmatprep.subr.bf16.mxu0 0
        %1454 = vmatpush1.bf16.msra.mxu0 0
        %1455 = vmatprep.subr.bf16.mxu0 %v1447
        %1456 = vmatpush1.bf16.msra.mxu0 %v1444
        %1457 = vmatprep.subr.bf16.mxu0 %v1435
        %1458 = vmatpush1.bf16.msra.mxu0 %v1434
        %1459 = vmatprep.subr.bf16.mxu0 %v1433
        %1460 = vmatpush1.bf16.msra.mxu0 %v1432
        %1461 = vmatprep.subr.bf16.mxu0 %v1431
        %1462 = vmatpush1.bf16.msra.mxu0 %v1430
        %1463 = vmatprep.subr.bf16.mxu0 %v1429
        %1464 = vmatpush1.bf16.msra.mxu0 %v1428
        %1465 = vmatprep.subr.bf16.mxu0 0
        %1466 = vmatpush2.bf16.msra.mxu0 0
        %1467 = vmatprep.subr.bf16.mxu0 0
        %1468 = vmatpush2.bf16.msra.mxu0 0
        %1469 = vmatprep.subr.bf16.mxu0 0
        %1470 = vmatpush2.bf16.msra.mxu0 0
        %1471 = vmatprep.subr.bf16.mxu0 0
        %1472 = vmatpush2.bf16.msra.mxu0 0
        %1473 = vmatprep.subr.bf16.mxu0 0
        %1474 = vmatpush2.bf16.msra.mxu0 0
        %1475 = vmatprep.subr.bf16.mxu0 0
        %1476 = vmatpush2.bf16.msra.mxu0 0
        %1477 = vmatprep.subr.bf16.mxu0 0
        %1478 = vmatpush2.bf16.msra.mxu0 0
        %1479 = vmatprep.subr.bf16.mxu0 0
        %1480 = vmatpush2.bf16.msra.mxu0 0
        %1481 = vmatprep.mubr.bf16.mxu0 0
        %1482 = vmatmul.mubr.bf16.gmra.mxu0 %v1440
        %v1483 = vpop.f32.mrf.mxu0
        %v1484 = vadd.f32 0.0, %v1483
        %v1485 = vpop.f32.mrf.mxu0
        %v1486 = vadd.f32 0.0, %v1485
        %v1487 = vpop.f32.mrf.mxu0
        %v1488 = vpop.f32.mrf.mxu0
        %1489 = vdwg.mxu0
        %v1490 = vadd.f32 %v1043, %v1484
        %v1491 = vadd.f32 %v1045, %v1486
        %v1492 = vtanh.pop %v1490
        %v1493 = vtanh.pop %v1491
        %v1494 = vmul.f32 %v1070, %v846
        %v1495 = vmul.f32 %v1072, %v847
        %v1496 = vsub.f32 1.0, %v1070
        %v1497 = vsub.f32 1.0, %v1072
        %v1498 = vmul.f32 %v1496, %v1492
        %v1499 = vmul.f32 %v1497, %v1493
        %v1500 = vadd.f32 %v1494, %v1498
        %v1501 = vadd.f32 %v1495, %v1499
        %1502 = vst [vmem:[%s257] sm:$0xff] %v1500
        %1503 = vst [vmem:[%s257 + $0x8] sm:$0xff] %v1501
        %s1504 = sand.u32 %s141, 1
        %s1505 = scalar_lea.sflag [#allocation7], %s1504
        %s1506 = sand.u32 %s141, 1
        %s1507 = smul.addr %s1506, 16
        %s1508 = scalar_lea.vmem [#allocation10], %s1507
        // Predicated region
        $region49: #{tpu_custom_call.1} parent=39 // pred_check
          %p1509 = pneg %p151
        $region50: #{tpu_custom_call.1} parent=39 // pred_check_branch
          %1511 = sbr.rel (%p1509) target = $region52
        $region51: #{tpu_custom_call.1} parent=39 // pred_region
          %s1513 = ssub.s32 256, 256
          %1514 = vsyncadd %s1505, %s1513
          %s1515 = smul.addr %s23, 2
          %s1516 = smul.addr %s1515, 128
          %s1517 = scalar_lea.hbm %s5, %s1516
          %s1519 = sshll.u32 %s1508, 4
          %s1520 = int_to_ptr.vmem [resolvable:$true] %s1519
          %1522 = dma.vmem_to_hbm [thread:$0]  %s1520, 256, %s1517, %s1505
        $region52: #{tpu_custom_call.1} parent=39 // pred_fallthru
          _
      $region40: #{tpu_custom_call.1} parent=5 // pred_fallthru
        _
      %p1523 = scmp.le.s32.totalorder 2, %s18
      // Predicated region
      $region53: #{tpu_custom_call.1} parent=5 // pred_check
        %p1524 = pneg %p1523
      $region54: #{tpu_custom_call.1} parent=5 // pred_check_branch
        %1526 = sbr.rel (%p1524) target = $region56
      $region55: #{tpu_custom_call.1} parent=5 // pred_region
        %s1527 = ssub.s32 %s18, 2
        // Predicated region
        $region57: #{tpu_custom_call.1} parent=55 // pred_check
          %p1528 = pneg %p157
        $region58: #{tpu_custom_call.1} parent=55 // pred_check_branch
          %1530 = sbr.rel (%p1528) target = $region60
        $region59: #{tpu_custom_call.1} parent=55 // pred_region
          %s1531 = sand.u32 %s142, 1
          %s1532 = scalar_lea.sflag [#allocation7], %s1531
          %s1533 = sand.u32 %s142, 1
          %s1534 = smul.addr %s1533, 16
          %s1535 = scalar_lea.vmem [#allocation10], %s1534
          %1536 = dma.done %s1532, 256
        $region60: #{tpu_custom_call.1} parent=55 // pred_fallthru
          _
      $region56: #{tpu_custom_call.1} parent=5 // pred_fallthru
        _
    $region6: #{tpu_custom_call.1} parent=1 // loop_footer
      %s22 = sadd.s32 1, %s18
    $region7: #{tpu_custom_call.1} parent=1 // loop_footer_branch
      %17 = sbr.rel target = $region3
    $region8: #{tpu_custom_call.1} parent=1 // loop_exit
      _
    %1537 = vsyncpa [#allocation6], 1
    %s1538 = scalar_lea.sflag [#allocation6], 1
    %1539 = vsyncpa %s1538, 1
    %1540 = vsyncpa [#allocation9], 1
    %1541 = vsyncpa [#allocation7], 1
    %s1542 = scalar_lea.sflag [#allocation7], 1
    %1543 = vsyncpa %s1542, 1

</llo_original>
